<compile_context>
chip_gen: v5e
topology: v5e:2x2
jax: 0.10.0
libtpu: 0.0.40
codegen_flags: <defaults>
</compile_context>

<pallas_src>
import functools

import jax
import jax.numpy as jnp
from jax.experimental import pallas as pl
from jax.experimental.pallas import tpu as pltpu


def attention_kernel(num_heads, x_ref, wq_ref, wk_ref, wv_ref, wproj_ref, bproj_ref,
                     o_ref, attn_ref, ocat_ref):
    """Grid = (batch, head); heads iterate innermost ('arbitrary').

    x_ref    : (1, N, C)    input activations (head-invariant block)
    wq/wk/wv : (1, C, hd)   bf16 per-head projection weights (scale folded into Wq)
    wproj_ref: (C, C)       bf16 output-projection weight (grid-invariant)
    bproj_ref: (1, C)       f32 output-projection bias
    o_ref    : (1, N, C)    projected output -- written once, at the last head
    attn_ref : (1, 1, N, N) softmax attention weights for this (batch, head)
    ocat_ref : (N, C) bf16  VMEM scratch -- per-head outputs concatenated along C
    """
    h = pl.program_id(1)
    hd = wq_ref.shape[-1]

    xb = x_ref[0].astype(jnp.bfloat16)                                    # (N, C)

    # Per-head Q/K/V projections: K = C contractions on the MXU, f32 accumulation.
    q = jnp.dot(xb, wq_ref[0], preferred_element_type=jnp.float32)        # (N, hd), pre-scaled
    k = jnp.dot(xb, wk_ref[0], preferred_element_type=jnp.float32)        # (N, hd)
    v = jnp.dot(xb, wv_ref[0], preferred_element_type=jnp.float32).astype(jnp.bfloat16)

    # Scores + numerically stable softmax (f32 on VPU/EUP; scale already in Wq).
    s = jnp.einsum('nd,md->nm', q.astype(jnp.bfloat16), k.astype(jnp.bfloat16),
                   preferred_element_type=jnp.float32)                    # (N, N)
    s = s - jnp.max(s, axis=-1, keepdims=True)
    p = jnp.exp(s)
    pn = p * (1.0 / jnp.sum(p, axis=-1, keepdims=True))                   # exact row normalize
    attn_ref[0, 0] = pn.astype(attn_ref.dtype)

    # Per-head attention output, staged into the concat scratch.
    oh = jnp.dot(pn.astype(jnp.bfloat16), v,
                 preferred_element_type=jnp.float32).astype(jnp.bfloat16)  # (N, hd)
    # Unrolled over the static head count so every lane-slice store into the scratch
    # has a static offset (no dynamic minor-dim indexing); only one branch executes.
    for hh in range(num_heads):
        @pl.when(h == hh)
        def _(hh=hh):
            ocat_ref[:, hh * hd:(hh + 1) * hd] = oh

    # After the last head: ONE concat-then-project matmul (K = C keeps the MXU full
    # instead of num_heads separate K = hd projections).
    @pl.when(h == num_heads - 1)
    def _():
        y = jnp.dot(ocat_ref[...], wproj_ref[...], preferred_element_type=jnp.float32)
        o_ref[0] = (y + bproj_ref[...]).astype(o_ref.dtype)


def _vmem_limit_bytes():
    """~75% of physical VMEM: ≈48 MiB on v7x (64 MiB), ≈96 MiB on v5e/v6e (128 MiB)."""
    default_cap = 64 * 1024 * 1024
    try:
        info = pltpu.get_tpu_info()
        cap = getattr(info, "vmem_capacity_bytes", None) or default_cap
    except Exception:
        cap = default_cap
    return min(int(cap) * 3 // 4, 100 * 1024 * 1024)


def attention(x, wqkv, wproj, bproj, num_heads, attn_dtype=None):
    """x: (B, N, C); wqkv: (C, 3C); wproj: (C, C); bproj: (1, C). Returns (out, attn).

    attn_dtype: dtype of the returned attention weights (defaults to x.dtype); pass
    jnp.bfloat16 to halve the dominant HBM writeback if callers tolerate it.
    """
    B, N, C = x.shape
    assert C % num_heads == 0
    hd = C // num_heads
    scale = float(hd) ** (-0.5)
    attn_dtype = attn_dtype or x.dtype

    # --- one-time weight prep (layout + dtype) -------------------------------
    # PyTorch's fused qkv output axis (3C) factors as (3, num_heads, head_dim).
    # Split into per-head q/k/v weights so the kernel never lane-slices at head_dim
    # offsets, and fold the softmax scale into Wq.
    w3 = wqkv.reshape(C, 3, num_heads, hd).transpose(1, 2, 0, 3)   # (3, nh, C, hd)
    wq = (w3[0] * scale).astype(jnp.bfloat16)                      # (nh, C, hd)
    wk = w3[1].astype(jnp.bfloat16)
    wv = w3[2].astype(jnp.bfloat16)
    wproj_bf = wproj.astype(jnp.bfloat16)                          # (C, C)
    bproj_f32 = bproj.astype(jnp.float32).reshape(1, C)

    kernel = functools.partial(attention_kernel, num_heads)

    def build(single_buffer_weights):
        def invariant_spec(shape):
            kwargs = {}
            if single_buffer_weights:
                # Grid-invariant weights: drop the second resident copy (matters most
                # inside v7x's 64 MiB VMEM).
                kwargs["pipeline_mode"] = pl.Buffered(1)
            return pl.BlockSpec(shape, lambda b, h: (0,) * len(shape), **kwargs)

        head_w_spec = pl.BlockSpec((1, C, hd), lambda b, h: (h, 0, 0))
        return pl.pallas_call(
            kernel,
            out_shape=(
                jax.ShapeDtypeStruct((B, N, C), x.dtype),
                jax.ShapeDtypeStruct((B, num_heads, N, N), attn_dtype),
            ),
            grid=(B, num_heads),
            in_specs=[
                pl.BlockSpec((1, N, C), lambda b, h: (b, 0, 0)),    # x (head-invariant)
                head_w_spec,                                        # Wq (per head, pre-scaled)
                head_w_spec,                                        # Wk (per head)
                head_w_spec,                                        # Wv (per head)
                invariant_spec((C, C)),                             # Wproj
                invariant_spec((1, C)),                             # bproj
            ],
            out_specs=(
                pl.BlockSpec((1, N, C), lambda b, h: (b, 0, 0)),        # out (last head only)
                pl.BlockSpec((1, 1, N, N), lambda b, h: (b, h, 0, 0)),  # attn, tiled per head
            ),
            scratch_shapes=[pltpu.VMEM((N, C), jnp.bfloat16)],          # concat of head outputs
            compiler_params=pltpu.CompilerParams(
                dimension_semantics=("parallel", "arbitrary"),
                vmem_limit_bytes=_vmem_limit_bytes(),
            ),
        )

    args = (x, wq, wk, wv, wproj_bf, bproj_f32)
    try:
        out, attn = build(True)(*args)
    except Exception:
        # pipeline_mode=pl.Buffered(1) unsupported in this JAX version; fall back to
        # default double-buffered weights (correctness unaffected).
        out, attn = build(False)(*args)
    return out, attn


def attention_reference(x, wqkv, wproj, bproj, num_heads):
    """Pure-JAX f32 reference matching the PyTorch forward (eval mode)."""
    B, N, C = x.shape
    hd = C // num_heads
    scale = hd ** (-0.5)
    qkv = x @ wqkv                                              # (B, N, 3C)
    qkv = qkv.reshape(B, N, 3, num_heads, hd).transpose(2, 0, 3, 1, 4)
    q, k, v = qkv[0], qkv[1], qkv[2]                            # (B, nh, N, hd)
    attn = jax.nn.softmax(jnp.einsum("bhnd,bhmd->bhnm", q, k) * scale, axis=-1)
    o = jnp.einsum("bhnm,bhmd->bhnd", attn, v).transpose(0, 2, 1, 3).reshape(B, N, C)
    out = o @ wproj + bproj.reshape(1, 1, C)
    return out, attn


if __name__ == "__main__":
    B, N, C = 2, 8, 32
    num_heads = 4

    key = jax.random.PRNGKey(0)
    k0, k1, k2, k3 = jax.random.split(key, 4)
    x = jax.random.normal(k0, (B, N, C), jnp.float32)
    wqkv = 0.05 * jax.random.normal(k1, (C, 3 * C), jnp.float32)   # PyTorch qkv.weight^T
    wproj = 0.05 * jax.random.normal(k2, (C, C), jnp.float32)      # PyTorch proj.weight^T
    bproj = 0.05 * jax.random.normal(k3, (1, C), jnp.float32)

    out, attn = attention(x, wqkv, wproj, bproj, num_heads)
    out = jax.block_until_ready(out)
    attn = jax.block_until_ready(attn)

    out_r, attn_r = attention_reference(x, wqkv, wproj, bproj, num_heads)

    assert out.shape == (B, N, C)
    assert attn.shape == (B, num_heads, N, N)
    # bf16 matmul operands => compare against the f32 reference loosely.
    assert jnp.allclose(out, out_r, atol=2e-2, rtol=2e-2), float(
        jnp.max(jnp.abs(out - out_r)))
    assert jnp.allclose(attn, attn_r, atol=2e-2, rtol=2e-2), float(
        jnp.max(jnp.abs(attn - attn_r)))
    print("KERNEL_OK")
</pallas_src>

<mosaic_0001>
module attributes {stable_mosaic.version = 11 : i64} {
  func.func @attention_kernel(%arg0: i32, %arg1: i32, %arg2: memref<1x8x32xf32, #tpu.memory_space<vmem>>, %arg3: memref<1x32x8xbf16, #tpu.memory_space<vmem>>, %arg4: memref<1x32x8xbf16, #tpu.memory_space<vmem>>, %arg5: memref<1x32x8xbf16, #tpu.memory_space<vmem>>, %arg6: memref<32x32xbf16, #tpu.memory_space<vmem>>, %arg7: memref<1x32xf32, #tpu.memory_space<vmem>>, %arg8: memref<1x8x32xf32, #tpu.memory_space<vmem>>, %arg9: memref<1x1x8x8xf32, #tpu.memory_space<vmem>>, %arg10: memref<8x32xbf16, #tpu.memory_space<vmem>>) attributes {dimension_semantics = [#tpu.dimension_semantics<parallel>, #tpu.dimension_semantics<arbitrary>], iteration_bounds = array<i64: 2, 4>, scalar_prefetch = 0 : i64, scratch_operands = 1 : i64, tpu.core_type = #tpu.core_type<tc>, window_params = [{transform_indices = @transform_0, window_bounds = array<i64: 1, 8, 32>}, {transform_indices = @transform_1, window_bounds = array<i64: 1, 32, 8>}, {transform_indices = @transform_2, window_bounds = array<i64: 1, 32, 8>}, {transform_indices = @transform_3, window_bounds = array<i64: 1, 32, 8>}, {pipeline_mode = #tpu.pipeline_mode<synchronous>, transform_indices = @transform_4, window_bounds = array<i64: 32, 32>}, {pipeline_mode = #tpu.pipeline_mode<synchronous>, transform_indices = @transform_5, window_bounds = array<i64: 1, 32>}, {transform_indices = @transform_6, window_bounds = array<i64: 1, 8, 32>}, {transform_indices = @transform_7, window_bounds = array<i64: 1, 1, 8, 8>}]} {
    %c0 = arith.constant 0 : index
    %c0_0 = arith.constant 0 : index
    %c0_1 = arith.constant 0 : index
    %0 = vector.load %arg2[%c0, %c0_0, %c0_1] : memref<1x8x32xf32, #tpu.memory_space<vmem>>, vector<1x8x32xf32>
    %1 = vector.shape_cast %0 : vector<1x8x32xf32> to vector<8x32xf32>
    %2 = arith.truncf %1 : vector<8x32xf32> to vector<8x32xbf16>
    %c0_2 = arith.constant 0 : index
    %c0_3 = arith.constant 0 : index
    %c0_4 = arith.constant 0 : index
    %3 = vector.load %arg3[%c0_2, %c0_3, %c0_4] : memref<1x32x8xbf16, #tpu.memory_space<vmem>>, vector<1x32x8xbf16>
    %4 = vector.shape_cast %3 : vector<1x32x8xbf16> to vector<32x8xbf16>
    %cst = arith.constant dense<0.000000e+00> : vector<8x8xf32>
    %5 = tpu.matmul %2, %4, %cst {dimension_numbers = #tpu.dot_dimension_numbers<[1], [0], [0], [1], [0, 0, 1, 1], [], []>} : vector<8x32xbf16>, vector<32x8xbf16>, vector<8x8xf32> -> vector<8x8xf32>
    %c0_5 = arith.constant 0 : index
    %c0_6 = arith.constant 0 : index
    %c0_7 = arith.constant 0 : index
    %6 = vector.load %arg4[%c0_5, %c0_6, %c0_7] : memref<1x32x8xbf16, #tpu.memory_space<vmem>>, vector<1x32x8xbf16>
    %7 = vector.shape_cast %6 : vector<1x32x8xbf16> to vector<32x8xbf16>
    %cst_8 = arith.constant dense<0.000000e+00> : vector<8x8xf32>
    %8 = tpu.matmul %2, %7, %cst_8 {dimension_numbers = #tpu.dot_dimension_numbers<[1], [0], [0], [1], [0, 0, 1, 1], [], []>} : vector<8x32xbf16>, vector<32x8xbf16>, vector<8x8xf32> -> vector<8x8xf32>
    %c0_9 = arith.constant 0 : index
    %c0_10 = arith.constant 0 : index
    %c0_11 = arith.constant 0 : index
    %9 = vector.load %arg5[%c0_9, %c0_10, %c0_11] : memref<1x32x8xbf16, #tpu.memory_space<vmem>>, vector<1x32x8xbf16>
    %10 = vector.shape_cast %9 : vector<1x32x8xbf16> to vector<32x8xbf16>
    %cst_12 = arith.constant dense<0.000000e+00> : vector<8x8xf32>
    %11 = tpu.matmul %2, %10, %cst_12 {dimension_numbers = #tpu.dot_dimension_numbers<[1], [0], [0], [1], [0, 0, 1, 1], [], []>} : vector<8x32xbf16>, vector<32x8xbf16>, vector<8x8xf32> -> vector<8x8xf32>
    %12 = arith.truncf %11 : vector<8x8xf32> to vector<8x8xbf16>
    %13 = arith.truncf %5 : vector<8x8xf32> to vector<8x8xbf16>
    %14 = arith.truncf %8 : vector<8x8xf32> to vector<8x8xbf16>
    "tpu.trace_start"() <{level = 10 : i32, message = "nd,md->nm"}> : () -> ()
    %cst_13 = arith.constant dense<0.000000e+00> : vector<8x8xf32>
    %15 = tpu.matmul %13, %14, %cst_13 {dimension_numbers = #tpu.dot_dimension_numbers<[1], [1], [0], [0], [0, 0, 1, 0], [], []>} : vector<8x8xbf16>, vector<8x8xbf16>, vector<8x8xf32> -> vector<8x8xf32>
    "tpu.trace_stop"() : () -> ()
    %cst_14 = arith.constant dense<0xFF800000> : vector<8xf32>
    %16 = vector.multi_reduction <maximumf>, %15, %cst_14 [1] : vector<8x8xf32> to vector<8xf32>
    %17 = vector.shape_cast %16 : vector<8xf32> to vector<8x1xf32>
    %18 = vector.broadcast %17 : vector<8x1xf32> to vector<8x8xf32>
    %19 = arith.subf %15, %18 : vector<8x8xf32>
    %20 = math.exp %19 : vector<8x8xf32>
    %cst_15 = arith.constant dense<0.000000e+00> : vector<8xf32>
    %21 = vector.multi_reduction <add>, %20, %cst_15 [1] : vector<8x8xf32> to vector<8xf32>
    %22 = vector.shape_cast %21 : vector<8xf32> to vector<8x1xf32>
    %cst_16 = arith.constant 1.000000e+00 : f32
    %23 = vector.broadcast %cst_16 : f32 to vector<8x1xf32>
    %24 = arith.divf %23, %22 : vector<8x1xf32>
    %25 = vector.broadcast %24 : vector<8x1xf32> to vector<8x8xf32>
    %26 = arith.mulf %20, %25 : vector<8x8xf32>
    %c0_17 = arith.constant 0 : index
    %c0_18 = arith.constant 0 : index
    %c0_19 = arith.constant 0 : index
    %c0_20 = arith.constant 0 : index
    %27 = vector.load %arg9[%c0_17, %c0_18, %c0_19, %c0_20] : memref<1x1x8x8xf32, #tpu.memory_space<vmem>>, vector<1x1x8x8xf32>
    %28 = vector.shape_cast %27 : vector<1x1x8x8xf32> to vector<8x8xf32>
    %29 = vector.shape_cast %26 : vector<8x8xf32> to vector<1x1x8x8xf32>
    tpu.vector_store %arg9[%c0_17, %c0_18, %c0_19, %c0_20], %29 {strides = array<i32>} : memref<1x1x8x8xf32, #tpu.memory_space<vmem>>, vector<1x1x8x8xf32>,
    %30 = arith.truncf %26 : vector<8x8xf32> to vector<8x8xbf16>
    %cst_21 = arith.constant dense<0.000000e+00> : vector<8x8xf32>
    %31 = tpu.matmul %30, %12, %cst_21 {dimension_numbers = #tpu.dot_dimension_numbers<[1], [0], [0], [1], [0, 0, 1, 1], [], []>} : vector<8x8xbf16>, vector<8x8xbf16>, vector<8x8xf32> -> vector<8x8xf32>
    %32 = arith.truncf %31 : vector<8x8xf32> to vector<8x8xbf16>
    %c0_i32 = arith.constant 0 : i32
    %33 = arith.cmpi eq, %arg1, %c0_i32 : i32
    %34 = arith.extui %33 : i1 to i32
    %c0_i32_22 = arith.constant 0 : i32
    %35 = arith.cmpi ne, %34, %c0_i32_22 : i32
    scf.if %35 {
      %c0_28 = arith.constant 0 : index
      %c0_29 = arith.constant 0 : index
      %48 = vector.load %arg10[%c0_28, %c0_29] : memref<8x32xbf16, #tpu.memory_space<vmem>>, vector<8x8xbf16>
      tpu.vector_store %arg10[%c0_28, %c0_29], %32 {strides = array<i32>} : memref<8x32xbf16, #tpu.memory_space<vmem>>, vector<8x8xbf16>,
    } else {
    }
    %c1_i32 = arith.constant 1 : i32
    %36 = arith.cmpi eq, %arg1, %c1_i32 : i32
    %37 = arith.extui %36 : i1 to i32
    %c0_i32_23 = arith.constant 0 : i32
    %38 = arith.cmpi ne, %37, %c0_i32_23 : i32
    scf.if %38 {
      %c0_28 = arith.constant 0 : index
      %c8 = arith.constant 8 : index
      %48 = vector.load %arg10[%c0_28, %c8] : memref<8x32xbf16, #tpu.memory_space<vmem>>, vector<8x8xbf16>
      tpu.vector_store %arg10[%c0_28, %c8], %32 {strides = array<i32>} : memref<8x32xbf16, #tpu.memory_space<vmem>>, vector<8x8xbf16>,
    } else {
    }
    %c2_i32 = arith.constant 2 : i32
    %39 = arith.cmpi eq, %arg1, %c2_i32 : i32
    %40 = arith.extui %39 : i1 to i32
    %c0_i32_24 = arith.constant 0 : i32
    %41 = arith.cmpi ne, %40, %c0_i32_24 : i32
    scf.if %41 {
      %c0_28 = arith.constant 0 : index
      %c16 = arith.constant 16 : index
      %48 = vector.load %arg10[%c0_28, %c16] : memref<8x32xbf16, #tpu.memory_space<vmem>>, vector<8x8xbf16>
      tpu.vector_store %arg10[%c0_28, %c16], %32 {strides = array<i32>} : memref<8x32xbf16, #tpu.memory_space<vmem>>, vector<8x8xbf16>,
    } else {
    }
    %c3_i32 = arith.constant 3 : i32
    %42 = arith.cmpi eq, %arg1, %c3_i32 : i32
    %43 = arith.extui %42 : i1 to i32
    %c0_i32_25 = arith.constant 0 : i32
    %44 = arith.cmpi ne, %43, %c0_i32_25 : i32
    scf.if %44 {
      %c0_28 = arith.constant 0 : index
      %c24 = arith.constant 24 : index
      %48 = vector.load %arg10[%c0_28, %c24] : memref<8x32xbf16, #tpu.memory_space<vmem>>, vector<8x8xbf16>
      tpu.vector_store %arg10[%c0_28, %c24], %32 {strides = array<i32>} : memref<8x32xbf16, #tpu.memory_space<vmem>>, vector<8x8xbf16>,
    } else {
    }
    %c3_i32_26 = arith.constant 3 : i32
    %45 = arith.cmpi eq, %arg1, %c3_i32_26 : i32
    %46 = arith.extui %45 : i1 to i32
    %c0_i32_27 = arith.constant 0 : i32
    %47 = arith.cmpi ne, %46, %c0_i32_27 : i32
    scf.if %47 {
      %c0_28 = arith.constant 0 : index
      %c0_29 = arith.constant 0 : index
      %48 = vector.load %arg10[%c0_28, %c0_29] : memref<8x32xbf16, #tpu.memory_space<vmem>>, vector<8x32xbf16>
      %c0_30 = arith.constant 0 : index
      %c0_31 = arith.constant 0 : index
      %49 = vector.load %arg6[%c0_30, %c0_31] : memref<32x32xbf16, #tpu.memory_space<vmem>>, vector<32x32xbf16>
      %cst_32 = arith.constant dense<0.000000e+00> : vector<8x32xf32>
      %50 = tpu.matmul %48, %49, %cst_32 {dimension_numbers = #tpu.dot_dimension_numbers<[1], [0], [0], [1], [0, 0, 1, 1], [], []>} : vector<8x32xbf16>, vector<32x32xbf16>, vector<8x32xf32> -> vector<8x32xf32>
      %c0_33 = arith.constant 0 : index
      %c0_34 = arith.constant 0 : index
      %51 = vector.load %arg7[%c0_33, %c0_34] : memref<1x32xf32, #tpu.memory_space<vmem>>, vector<1x32xf32>
      %52 = vector.broadcast %51 : vector<1x32xf32> to vector<8x32xf32>
      %53 = arith.addf %50, %52 : vector<8x32xf32>
      %c0_35 = arith.constant 0 : index
      %c0_36 = arith.constant 0 : index
      %c0_37 = arith.constant 0 : index
      %54 = vector.load %arg8[%c0_35, %c0_36, %c0_37] : memref<1x8x32xf32, #tpu.memory_space<vmem>>, vector<1x8x32xf32>
      %55 = vector.shape_cast %54 : vector<1x8x32xf32> to vector<8x32xf32>
      %56 = vector.shape_cast %53 : vector<8x32xf32> to vector<1x8x32xf32>
      tpu.vector_store %arg8[%c0_35, %c0_36, %c0_37], %56 {strides = array<i32>} : memref<1x8x32xf32, #tpu.memory_space<vmem>>, vector<1x8x32xf32>,
    } else {
    }
    return
  }
  func.func @transform_0(%arg0: i32, %arg1: i32) -> (i32, i32, i32) {
    %c0_i32 = arith.constant 0 : i32
    %c0_i32_0 = arith.constant 0 : i32
    %c0_i32_1 = arith.constant 0 : i32
    return %arg0, %c0_i32, %c0_i32_0 : i32, i32, i32
  }
  func.func @transform_1(%arg0: i32, %arg1: i32) -> (i32, i32, i32) {
    %c0_i32 = arith.constant 0 : i32
    %c0_i32_0 = arith.constant 0 : i32
    %c0_i32_1 = arith.constant 0 : i32
    return %arg1, %c0_i32, %c0_i32_0 : i32, i32, i32
  }
  func.func @transform_2(%arg0: i32, %arg1: i32) -> (i32, i32, i32) {
    %c0_i32 = arith.constant 0 : i32
    %c0_i32_0 = arith.constant 0 : i32
    %c0_i32_1 = arith.constant 0 : i32
    return %arg1, %c0_i32, %c0_i32_0 : i32, i32, i32
  }
  func.func @transform_3(%arg0: i32, %arg1: i32) -> (i32, i32, i32) {
    %c0_i32 = arith.constant 0 : i32
    %c0_i32_0 = arith.constant 0 : i32
    %c0_i32_1 = arith.constant 0 : i32
    return %arg1, %c0_i32, %c0_i32_0 : i32, i32, i32
  }
  func.func @transform_4(%arg0: i32, %arg1: i32) -> (i32, i32) {
    %c0_i32 = arith.constant 0 : i32
    %c0_i32_0 = arith.constant 0 : i32
    %c0_i32_1 = arith.constant 0 : i32
    return %c0_i32, %c0_i32_0 : i32, i32
  }
  func.func @transform_5(%arg0: i32, %arg1: i32) -> (i32, i32) {
    %c0_i32 = arith.constant 0 : i32
    %c0_i32_0 = arith.constant 0 : i32
    %c0_i32_1 = arith.constant 0 : i32
    return %c0_i32, %c0_i32_0 : i32, i32
  }
  func.func @transform_6(%arg0: i32, %arg1: i32) -> (i32, i32, i32) {
    %c0_i32 = arith.constant 0 : i32
    %c0_i32_0 = arith.constant 0 : i32
    %c0_i32_1 = arith.constant 0 : i32
    return %arg0, %c0_i32, %c0_i32_0 : i32, i32, i32
  }
  func.func @transform_7(%arg0: i32, %arg1: i32) -> (i32, i32, i32, i32) {
    %c0_i32 = arith.constant 0 : i32
    %c0_i32_0 = arith.constant 0 : i32
    %c0_i32_1 = arith.constant 0 : i32
    return %arg0, %arg1, %c0_i32, %c0_i32_0 : i32, i32, i32, i32
  }
}

module attributes {stable_mosaic.version = 11 : i64} {
  func.func @attention_kernel(%arg0: i32, %arg1: i32, %arg2: memref<1x8x32xf32, #tpu.memory_space<vmem>>, %arg3: memref<1x32x8xbf16, #tpu.memory_space<vmem>>, %arg4: memref<1x32x8xbf16, #tpu.memory_space<vmem>>, %arg5: memref<1x32x8xbf16, #tpu.memory_space<vmem>>, %arg6: memref<32x32xbf16, #tpu.memory_space<vmem>>, %arg7: memref<1x32xf32, #tpu.memory_space<vmem>>, %arg8: memref<1x8x32xf32, #tpu.memory_space<vmem>>, %arg9: memref<1x1x8x8xf32, #tpu.memory_space<vmem>>, %arg10: memref<8x32xbf16, #tpu.memory_space<vmem>>) attributes {dimension_semantics = [#tpu.dimension_semantics<parallel>, #tpu.dimension_semantics<arbitrary>], iteration_bounds = array<i64: 2, 4>, scalar_prefetch = 0 : i64, scratch_operands = 1 : i64, tpu.core_type = #tpu.core_type<tc>, window_params = [{transform_indices = @transform_0, window_bounds = array<i64: 1, 8, 32>}, {transform_indices = @transform_1, window_bounds = array<i64: 1, 32, 8>}, {transform_indices = @transform_2, window_bounds = array<i64: 1, 32, 8>}, {transform_indices = @transform_3, window_bounds = array<i64: 1, 32, 8>}, {pipeline_mode = #tpu.pipeline_mode<synchronous>, transform_indices = @transform_4, window_bounds = array<i64: 32, 32>}, {pipeline_mode = #tpu.pipeline_mode<synchronous>, transform_indices = @transform_5, window_bounds = array<i64: 1, 32>}, {transform_indices = @transform_6, window_bounds = array<i64: 1, 8, 32>}, {transform_indices = @transform_7, window_bounds = array<i64: 1, 1, 8, 8>}]} {
    %c0 = arith.constant 0 : index
    %c0_0 = arith.constant 0 : index
    %c0_1 = arith.constant 0 : index
    %0 = vector.load %arg2[%c0, %c0_0, %c0_1] : memref<1x8x32xf32, #tpu.memory_space<vmem>>, vector<1x8x32xf32>
    %1 = vector.shape_cast %0 : vector<1x8x32xf32> to vector<8x32xf32>
    %2 = arith.truncf %1 : vector<8x32xf32> to vector<8x32xbf16>
    %c0_2 = arith.constant 0 : index
    %c0_3 = arith.constant 0 : index
    %c0_4 = arith.constant 0 : index
    %3 = vector.load %arg3[%c0_2, %c0_3, %c0_4] : memref<1x32x8xbf16, #tpu.memory_space<vmem>>, vector<1x32x8xbf16>
    %4 = vector.shape_cast %3 : vector<1x32x8xbf16> to vector<32x8xbf16>
    %cst = arith.constant dense<0.000000e+00> : vector<8x8xf32>
    %5 = tpu.matmul %2, %4, %cst {dimension_numbers = #tpu.dot_dimension_numbers<[1], [0], [0], [1], [0, 0, 1, 1], [], []>} : vector<8x32xbf16>, vector<32x8xbf16>, vector<8x8xf32> -> vector<8x8xf32>
    %c0_5 = arith.constant 0 : index
    %c0_6 = arith.constant 0 : index
    %c0_7 = arith.constant 0 : index
    %6 = vector.load %arg4[%c0_5, %c0_6, %c0_7] : memref<1x32x8xbf16, #tpu.memory_space<vmem>>, vector<1x32x8xbf16>
    %7 = vector.shape_cast %6 : vector<1x32x8xbf16> to vector<32x8xbf16>
    %cst_8 = arith.constant dense<0.000000e+00> : vector<8x8xf32>
    %8 = tpu.matmul %2, %7, %cst_8 {dimension_numbers = #tpu.dot_dimension_numbers<[1], [0], [0], [1], [0, 0, 1, 1], [], []>} : vector<8x32xbf16>, vector<32x8xbf16>, vector<8x8xf32> -> vector<8x8xf32>
    %c0_9 = arith.constant 0 : index
    %c0_10 = arith.constant 0 : index
    %c0_11 = arith.constant 0 : index
    %9 = vector.load %arg5[%c0_9, %c0_10, %c0_11] : memref<1x32x8xbf16, #tpu.memory_space<vmem>>, vector<1x32x8xbf16>
    %10 = vector.shape_cast %9 : vector<1x32x8xbf16> to vector<32x8xbf16>
    %cst_12 = arith.constant dense<0.000000e+00> : vector<8x8xf32>
    %11 = tpu.matmul %2, %10, %cst_12 {dimension_numbers = #tpu.dot_dimension_numbers<[1], [0], [0], [1], [0, 0, 1, 1], [], []>} : vector<8x32xbf16>, vector<32x8xbf16>, vector<8x8xf32> -> vector<8x8xf32>
    %12 = arith.truncf %11 : vector<8x8xf32> to vector<8x8xbf16>
    %13 = arith.truncf %5 : vector<8x8xf32> to vector<8x8xbf16>
    %14 = arith.truncf %8 : vector<8x8xf32> to vector<8x8xbf16>
    "tpu.trace_start"() <{level = 10 : i32, message = "nd,md->nm"}> : () -> ()
    %cst_13 = arith.constant dense<0.000000e+00> : vector<8x8xf32>
    %15 = tpu.matmul %13, %14, %cst_13 {dimension_numbers = #tpu.dot_dimension_numbers<[1], [1], [0], [0], [0, 0, 1, 0], [], []>} : vector<8x8xbf16>, vector<8x8xbf16>, vector<8x8xf32> -> vector<8x8xf32>
    "tpu.trace_stop"() : () -> ()
    %cst_14 = arith.constant dense<0xFF800000> : vector<8xf32>
    %16 = vector.multi_reduction <maximumf>, %15, %cst_14 [1] : vector<8x8xf32> to vector<8xf32>
    %17 = vector.shape_cast %16 : vector<8xf32> to vector<8x1xf32>
    %18 = vector.broadcast %17 : vector<8x1xf32> to vector<8x8xf32>
    %19 = arith.subf %15, %18 : vector<8x8xf32>
    %20 = math.exp %19 : vector<8x8xf32>
    %cst_15 = arith.constant dense<0.000000e+00> : vector<8xf32>
    %21 = vector.multi_reduction <add>, %20, %cst_15 [1] : vector<8x8xf32> to vector<8xf32>
    %22 = vector.shape_cast %21 : vector<8xf32> to vector<8x1xf32>
    %cst_16 = arith.constant 1.000000e+00 : f32
    %23 = vector.broadcast %cst_16 : f32 to vector<8x1xf32>
    %24 = arith.divf %23, %22 : vector<8x1xf32>
    %25 = vector.broadcast %24 : vector<8x1xf32> to vector<8x8xf32>
    %26 = arith.mulf %20, %25 : vector<8x8xf32>
    %c0_17 = arith.constant 0 : index
    %c0_18 = arith.constant 0 : index
    %c0_19 = arith.constant 0 : index
    %c0_20 = arith.constant 0 : index
    %27 = vector.load %arg9[%c0_17, %c0_18, %c0_19, %c0_20] : memref<1x1x8x8xf32, #tpu.memory_space<vmem>>, vector<1x1x8x8xf32>
    %28 = vector.shape_cast %27 : vector<1x1x8x8xf32> to vector<8x8xf32>
    %29 = vector.shape_cast %26 : vector<8x8xf32> to vector<1x1x8x8xf32>
    tpu.vector_store %arg9[%c0_17, %c0_18, %c0_19, %c0_20], %29 {strides = array<i32>} : memref<1x1x8x8xf32, #tpu.memory_space<vmem>>, vector<1x1x8x8xf32>,
    %30 = arith.truncf %26 : vector<8x8xf32> to vector<8x8xbf16>
    %cst_21 = arith.constant dense<0.000000e+00> : vector<8x8xf32>
    %31 = tpu.matmul %30, %12, %cst_21 {dimension_numbers = #tpu.dot_dimension_numbers<[1], [0], [0], [1], [0, 0, 1, 1], [], []>} : vector<8x8xbf16>, vector<8x8xbf16>, vector<8x8xf32> -> vector<8x8xf32>
    %32 = arith.truncf %31 : vector<8x8xf32> to vector<8x8xbf16>
    %c0_i32 = arith.constant 0 : i32
    %33 = arith.cmpi eq, %arg1, %c0_i32 : i32
    %34 = arith.extui %33 : i1 to i32
    %c0_i32_22 = arith.constant 0 : i32
    %35 = arith.cmpi ne, %34, %c0_i32_22 : i32
    scf.if %35 {
      %c0_28 = arith.constant 0 : index
      %c0_29 = arith.constant 0 : index
      %48 = vector.load %arg10[%c0_28, %c0_29] : memref<8x32xbf16, #tpu.memory_space<vmem>>, vector<8x8xbf16>
      tpu.vector_store %arg10[%c0_28, %c0_29], %32 {strides = array<i32>} : memref<8x32xbf16, #tpu.memory_space<vmem>>, vector<8x8xbf16>,
    } else {
    }
    %c1_i32 = arith.constant 1 : i32
    %36 = arith.cmpi eq, %arg1, %c1_i32 : i32
    %37 = arith.extui %36 : i1 to i32
    %c0_i32_23 = arith.constant 0 : i32
    %38 = arith.cmpi ne, %37, %c0_i32_23 : i32
    scf.if %38 {
      %c0_28 = arith.constant 0 : index
      %c8 = arith.constant 8 : index
      %48 = vector.load %arg10[%c0_28, %c8] : memref<8x32xbf16, #tpu.memory_space<vmem>>, vector<8x8xbf16>
      tpu.vector_store %arg10[%c0_28, %c8], %32 {strides = array<i32>} : memref<8x32xbf16, #tpu.memory_space<vmem>>, vector<8x8xbf16>,
    } else {
    }
    %c2_i32 = arith.constant 2 : i32
    %39 = arith.cmpi eq, %arg1, %c2_i32 : i32
    %40 = arith.extui %39 : i1 to i32
    %c0_i32_24 = arith.constant 0 : i32
    %41 = arith.cmpi ne, %40, %c0_i32_24 : i32
    scf.if %41 {
      %c0_28 = arith.constant 0 : index
      %c16 = arith.constant 16 : index
      %48 = vector.load %arg10[%c0_28, %c16] : memref<8x32xbf16, #tpu.memory_space<vmem>>, vector<8x8xbf16>
      tpu.vector_store %arg10[%c0_28, %c16], %32 {strides = array<i32>} : memref<8x32xbf16, #tpu.memory_space<vmem>>, vector<8x8xbf16>,
    } else {
    }
    %c3_i32 = arith.constant 3 : i32
    %42 = arith.cmpi eq, %arg1, %c3_i32 : i32
    %43 = arith.extui %42 : i1 to i32
    %c0_i32_25 = arith.constant 0 : i32
    %44 = arith.cmpi ne, %43, %c0_i32_25 : i32
    scf.if %44 {
      %c0_28 = arith.constant 0 : index
      %c24 = arith.constant 24 : index
      %48 = vector.load %arg10[%c0_28, %c24] : memref<8x32xbf16, #tpu.memory_space<vmem>>, vector<8x8xbf16>
      tpu.vector_store %arg10[%c0_28, %c24], %32 {strides = array<i32>} : memref<8x32xbf16, #tpu.memory_space<vmem>>, vector<8x8xbf16>,
    } else {
    }
    %c3_i32_26 = arith.constant 3 : i32
    %45 = arith.cmpi eq, %arg1, %c3_i32_26 : i32
    %46 = arith.extui %45 : i1 to i32
    %c0_i32_27 = arith.constant 0 : i32
    %47 = arith.cmpi ne, %46, %c0_i32_27 : i32
    scf.if %47 {
      %c0_28 = arith.constant 0 : index
      %c0_29 = arith.constant 0 : index
      %48 = vector.load %arg10[%c0_28, %c0_29] : memref<8x32xbf16, #tpu.memory_space<vmem>>, vector<8x32xbf16>
      %c0_30 = arith.constant 0 : index
      %c0_31 = arith.constant 0 : index
      %49 = vector.load %arg6[%c0_30, %c0_31] : memref<32x32xbf16, #tpu.memory_space<vmem>>, vector<32x32xbf16>
      %cst_32 = arith.constant dense<0.000000e+00> : vector<8x32xf32>
      %50 = tpu.matmul %48, %49, %cst_32 {dimension_numbers = #tpu.dot_dimension_numbers<[1], [0], [0], [1], [0, 0, 1, 1], [], []>} : vector<8x32xbf16>, vector<32x32xbf16>, vector<8x32xf32> -> vector<8x32xf32>
      %c0_33 = arith.constant 0 : index
      %c0_34 = arith.constant 0 : index
      %51 = vector.load %arg7[%c0_33, %c0_34] : memref<1x32xf32, #tpu.memory_space<vmem>>, vector<1x32xf32>
      %52 = vector.broadcast %51 : vector<1x32xf32> to vector<8x32xf32>
      %53 = arith.addf %50, %52 : vector<8x32xf32>
      %c0_35 = arith.constant 0 : index
      %c0_36 = arith.constant 0 : index
      %c0_37 = arith.constant 0 : index
      %54 = vector.load %arg8[%c0_35, %c0_36, %c0_37] : memref<1x8x32xf32, #tpu.memory_space<vmem>>, vector<1x8x32xf32>
      %55 = vector.shape_cast %54 : vector<1x8x32xf32> to vector<8x32xf32>
      %56 = vector.shape_cast %53 : vector<8x32xf32> to vector<1x8x32xf32>
      tpu.vector_store %arg8[%c0_35, %c0_36, %c0_37], %56 {strides = array<i32>} : memref<1x8x32xf32, #tpu.memory_space<vmem>>, vector<1x8x32xf32>,
    } else {
    }
    return
  }
  func.func @transform_0(%arg0: i32, %arg1: i32) -> (i32, i32, i32) {
    %c0_i32 = arith.constant 0 : i32
    %c0_i32_0 = arith.constant 0 : i32
    %c0_i32_1 = arith.constant 0 : i32
    return %arg0, %c0_i32, %c0_i32_0 : i32, i32, i32
  }
  func.func @transform_1(%arg0: i32, %arg1: i32) -> (i32, i32, i32) {
    %c0_i32 = arith.constant 0 : i32
    %c0_i32_0 = arith.constant 0 : i32
    %c0_i32_1 = arith.constant 0 : i32
    return %arg1, %c0_i32, %c0_i32_0 : i32, i32, i32
  }
  func.func @transform_2(%arg0: i32, %arg1: i32) -> (i32, i32, i32) {
    %c0_i32 = arith.constant 0 : i32
    %c0_i32_0 = arith.constant 0 : i32
    %c0_i32_1 = arith.constant 0 : i32
    return %arg1, %c0_i32, %c0_i32_0 : i32, i32, i32
  }
  func.func @transform_3(%arg0: i32, %arg1: i32) -> (i32, i32, i32) {
    %c0_i32 = arith.constant 0 : i32
    %c0_i32_0 = arith.constant 0 : i32
    %c0_i32_1 = arith.constant 0 : i32
    return %arg1, %c0_i32, %c0_i32_0 : i32, i32, i32
  }
  func.func @transform_4(%arg0: i32, %arg1: i32) -> (i32, i32) {
    %c0_i32 = arith.constant 0 : i32
    %c0_i32_0 = arith.constant 0 : i32
    %c0_i32_1 = arith.constant 0 : i32
    return %c0_i32, %c0_i32_0 : i32, i32
  }
  func.func @transform_5(%arg0: i32, %arg1: i32) -> (i32, i32) {
    %c0_i32 = arith.constant 0 : i32
    %c0_i32_0 = arith.constant 0 : i32
    %c0_i32_1 = arith.constant 0 : i32
    return %c0_i32, %c0_i32_0 : i32, i32
  }
  func.func @transform_6(%arg0: i32, %arg1: i32) -> (i32, i32, i32) {
    %c0_i32 = arith.constant 0 : i32
    %c0_i32_0 = arith.constant 0 : i32
    %c0_i32_1 = arith.constant 0 : i32
    return %arg0, %c0_i32, %c0_i32_0 : i32, i32, i32
  }
  func.func @transform_7(%arg0: i32, %arg1: i32) -> (i32, i32, i32, i32) {
    %c0_i32 = arith.constant 0 : i32
    %c0_i32_0 = arith.constant 0 : i32
    %c0_i32_1 = arith.constant 0 : i32
    return %arg0, %arg1, %c0_i32, %c0_i32_0 : i32, i32, i32, i32
  }
}

</mosaic_0001>

<llo_original>
// kernel: tpu_custom_call.1
$region0: #{tpu_custom_call.1}
  #allocation0 [shape = 'u32[]', space=smem, size = 0x4, offset = 0x4, fixed_abs, tag = 'smem constant byte address 0x4 - core index']
  #allocation1 [shape = 'u32[72,128]{1,0:T(1,128)}', space=vmem, size = 0x9000, scoped, tag = 'internal scratch']
  #allocation2 [shape = 'bf16[8,32]{1,0:T(8,128)(2,1)}', space=vmem, size = 0x800, scoped, tag = 'scratch operand']
  %s0 = inlined_call_operand.vmem [shape: f32[2,8,32], index: 0, kind: input, shape index: {}]
  %s1 = inlined_call_operand.vmem [shape: bf16[4,32,8], index: 1, kind: input, shape index: {}]
  %s2 = inlined_call_operand.vmem [shape: bf16[4,32,8], index: 2, kind: input, shape index: {}]
  %s3 = inlined_call_operand.vmem [shape: bf16[4,32,8], index: 3, kind: input, shape index: {}]
  %s4 = inlined_call_operand.vmem [shape: bf16[32,32], index: 4, kind: input, shape index: {}]
  %s5 = inlined_call_operand.vmem [shape: f32[1,32], index: 5, kind: input, shape index: {}]
  %s6 = inlined_call_operand.hbm [shape: f32[2,8,32], index: 6, kind: output, shape index: {0}]
  %s7 = inlined_call_operand.hbm [shape: f32[2,4,8,8], index: 7, kind: output, shape index: {1}]
  %8 = xla_tuple %s6, %s7
  %s9 = sld [smem:[#allocation0]]
  $region81: #{tpu_custom_call.1} parent=0
    _
  %s11 = ssub.s32 1, %s9
  %s12 = scalar_select 0, %s11, %s9
  $region1: #{tpu_custom_call.1} parent=0
    #allocation3 [shape = 'u8[8192]{0}', space=vmem, size = 0x2000, scoped, tag = 'output window, operand 0']
    #allocation4 [shape = 's32[2]{0}', space=sflag, size = 0x8, scoped, tag = 'scoped memory for tpu_custom_call.1']
    #allocation5 [shape = 'u8[8192]{0}', space=vmem, size = 0x2000, scoped, tag = 'output window, operand 1']
    #allocation6 [shape = 's32[2]{0}', space=sflag, size = 0x8, scoped, tag = 'scoped memory for tpu_custom_call.1']
    %13 = vsyncpa [#allocation4], 0
    %s14 = scalar_lea.sflag [#allocation4], 1
    %15 = vsyncpa %s14, 0
    %16 = vsyncpa [#allocation6], 0
    %s17 = scalar_lea.sflag [#allocation6], 1
    %18 = vsyncpa %s17, 0
    loop: start=0, step=1, limit=10
    $region2: #{tpu_custom_call.1} parent=1 // loop_pre_header
      _
    $region3: #{tpu_custom_call.1} parent=1 // loop_header
      %s20 = sphi 0, %s24
      %p21 = scmp.ge.s32.totalorder %s20, 10
      %s27 = sphi 0, %s39
      %s28 = sphi 0, %s35
      %s29 = sphi 0, %s27
      %s30 = sphi 0, %s28
      %s31 = sphi 0, %s29
      %s32 = sphi 0, %s30
      %s42 = sphi 0, %s44
      %s45 = sphi 0, %s42
      %s46 = sphi 0, %s45
      %s62 = sphi 0, %s46
      %s68 = sphi 0, %s70
      %s71 = sphi 0, %s68
      %s72 = sphi 0, %s71
      %s88 = sphi 0, %s72
      %s94 = sphi 0, %s96
      %s97 = sphi 0, %s94
      %s98 = sphi 0, %s97
      %s114 = sphi 0, %s98
      %s120 = sphi 0, %s122
      %s123 = sphi 0, %s120
      %s124 = sphi 0, %s123
      %s140 = sphi 0, %s124
      %s144 = sphi 0, %s144
      %s146 = sphi 0, %s144
      %s147 = sphi 0, %s146
      %s161 = sphi 0, %s147
      %s165 = sphi 0, %s165
      %s167 = sphi 0, %s165
      %s168 = sphi 0, %s167
      %s182 = sphi 0, %s168
      %s188 = sphi 0, %s190
      %s191 = sphi 0, %s188
      %s192 = sphi 0, %s191
      %s208 = sphi 0, %s192
      %s216 = sphi 0, %s218
      %s219 = sphi 0, %s216
      %s220 = sphi 0, %s219
      %s236 = sphi 0, %s220
    $region4: #{tpu_custom_call.1} parent=1 // loop_header_branch
      %23 = sbr.rel (%p21) target = $region8
    $region5: #{tpu_custom_call.1} parent=1 // loop_body
      %s25 = ssub.s32 %s20, 1
      %s26 = ssub.s32 %s20, 2
      %s33 = sadd.s32 1, %s28
      %p34 = scmp.ge.s32.totalorder %s33, 4
      %s35 = scalar_select %p34, 0, %s33
      %s36 = sadd.s32 1, %s27
      %s37 = scalar_select %p34, %s36, %s27
      %p38 = scmp.ge.s32.totalorder %s37, 2
      %s39 = scalar_select %p38, 0, %s37
      %s40 = ssub.s32 %s27, %s39
      %p41 = scmp.eq.s32.totalorder %s40, 0
      %s43 = sadd.s32 %s42, 1
      %s44 = scalar_select %p41, %s42, %s43
      %p47 = pneg %p41
      %p48 = scmp.eq.s32.totalorder %s20, 7
      %p49 = por %p47, %p48
      %p50 = scmp.ne.s32.totalorder %s42, %s45
      %p51 = scmp.eq.s32.totalorder %s20, 0
      %p52 = por %p50, %p51
      %p53 = scmp.ne.s32.totalorder %s42, %s45
      %p54 = scmp.eq.s32.totalorder %s25, 7
      %p55 = por %p53, %p54
      %p56 = scmp.ne.s32.totalorder %s45, %s46
      %p57 = scmp.eq.s32.totalorder %s25, 0
      %p58 = por %p56, %p57
      %p59 = scmp.ne.s32.totalorder %s45, %s46
      %p60 = scmp.eq.s32.totalorder %s26, 7
      %p61 = por %p59, %p60
      %p63 = scmp.ne.s32.totalorder %s46, %s62
      %p64 = scmp.eq.s32.totalorder %s26, 0
      %p65 = por %p63, %p64
      %s66 = ssub.s32 %s28, %s35
      %p67 = scmp.eq.s32.totalorder %s66, 0
      %s69 = sadd.s32 %s68, 1
      %s70 = scalar_select %p67, %s68, %s69
      %p73 = pneg %p67
      %p74 = scmp.eq.s32.totalorder %s20, 7
      %p75 = por %p73, %p74
      %p76 = scmp.ne.s32.totalorder %s68, %s71
      %p77 = scmp.eq.s32.totalorder %s20, 0
      %p78 = por %p76, %p77
      %p79 = scmp.ne.s32.totalorder %s68, %s71
      %p80 = scmp.eq.s32.totalorder %s25, 7
      %p81 = por %p79, %p80
      %p82 = scmp.ne.s32.totalorder %s71, %s72
      %p83 = scmp.eq.s32.totalorder %s25, 0
      %p84 = por %p82, %p83
      %p85 = scmp.ne.s32.totalorder %s71, %s72
      %p86 = scmp.eq.s32.totalorder %s26, 7
      %p87 = por %p85, %p86
      %p89 = scmp.ne.s32.totalorder %s72, %s88
      %p90 = scmp.eq.s32.totalorder %s26, 0
      %p91 = por %p89, %p90
      %s92 = ssub.s32 %s28, %s35
      %p93 = scmp.eq.s32.totalorder %s92, 0
      %s95 = sadd.s32 %s94, 1
      %s96 = scalar_select %p93, %s94, %s95
      %p99 = pneg %p93
      %p100 = scmp.eq.s32.totalorder %s20, 7
      %p101 = por %p99, %p100
      %p102 = scmp.ne.s32.totalorder %s94, %s97
      %p103 = scmp.eq.s32.totalorder %s20, 0
      %p104 = por %p102, %p103
      %p105 = scmp.ne.s32.totalorder %s94, %s97
      %p106 = scmp.eq.s32.totalorder %s25, 7
      %p107 = por %p105, %p106
      %p108 = scmp.ne.s32.totalorder %s97, %s98
      %p109 = scmp.eq.s32.totalorder %s25, 0
      %p110 = por %p108, %p109
      %p111 = scmp.ne.s32.totalorder %s97, %s98
      %p112 = scmp.eq.s32.totalorder %s26, 7
      %p113 = por %p111, %p112
      %p115 = scmp.ne.s32.totalorder %s98, %s114
      %p116 = scmp.eq.s32.totalorder %s26, 0
      %p117 = por %p115, %p116
      %s118 = ssub.s32 %s28, %s35
      %p119 = scmp.eq.s32.totalorder %s118, 0
      %s121 = sadd.s32 %s120, 1
      %s122 = scalar_select %p119, %s120, %s121
      %p125 = pneg %p119
      %p126 = scmp.eq.s32.totalorder %s20, 7
      %p127 = por %p125, %p126
      %p128 = scmp.ne.s32.totalorder %s120, %s123
      %p129 = scmp.eq.s32.totalorder %s20, 0
      %p130 = por %p128, %p129
      %p131 = scmp.ne.s32.totalorder %s120, %s123
      %p132 = scmp.eq.s32.totalorder %s25, 7
      %p133 = por %p131, %p132
      %p134 = scmp.ne.s32.totalorder %s123, %s124
      %p135 = scmp.eq.s32.totalorder %s25, 0
      %p136 = por %p134, %p135
      %p137 = scmp.ne.s32.totalorder %s123, %s124
      %p138 = scmp.eq.s32.totalorder %s26, 7
      %p139 = por %p137, %p138
      %p141 = scmp.ne.s32.totalorder %s124, %s140
      %p142 = scmp.eq.s32.totalorder %s26, 0
      %p143 = por %p141, %p142
      %s145 = sadd.s32 %s144, 1
      %p148 = scmp.eq.s32.totalorder %s20, 7
      %p149 = scmp.ne.s32.totalorder %s144, %s146
      %p150 = scmp.eq.s32.totalorder %s20, 0
      %p151 = por %p149, %p150
      %p152 = scmp.ne.s32.totalorder %s144, %s146
      %p153 = scmp.eq.s32.totalorder %s25, 7
      %p154 = por %p152, %p153
      %p155 = scmp.ne.s32.totalorder %s146, %s147
      %p156 = scmp.eq.s32.totalorder %s25, 0
      %p157 = por %p155, %p156
      %p158 = scmp.ne.s32.totalorder %s146, %s147
      %p159 = scmp.eq.s32.totalorder %s26, 7
      %p160 = por %p158, %p159
      %p162 = scmp.ne.s32.totalorder %s147, %s161
      %p163 = scmp.eq.s32.totalorder %s26, 0
      %p164 = por %p162, %p163
      %s166 = sadd.s32 %s165, 1
      %p169 = scmp.eq.s32.totalorder %s20, 7
      %p170 = scmp.ne.s32.totalorder %s165, %s167
      %p171 = scmp.eq.s32.totalorder %s20, 0
      %p172 = por %p170, %p171
      %p173 = scmp.ne.s32.totalorder %s165, %s167
      %p174 = scmp.eq.s32.totalorder %s25, 7
      %p175 = por %p173, %p174
      %p176 = scmp.ne.s32.totalorder %s167, %s168
      %p177 = scmp.eq.s32.totalorder %s25, 0
      %p178 = por %p176, %p177
      %p179 = scmp.ne.s32.totalorder %s167, %s168
      %p180 = scmp.eq.s32.totalorder %s26, 7
      %p181 = por %p179, %p180
      %p183 = scmp.ne.s32.totalorder %s168, %s182
      %p184 = scmp.eq.s32.totalorder %s26, 0
      %p185 = por %p183, %p184
      %s186 = ssub.s32 %s27, %s39
      %p187 = scmp.eq.s32.totalorder %s186, 0
      %s189 = sadd.s32 %s188, 1
      %s190 = scalar_select %p187, %s188, %s189
      %p193 = pneg %p187
      %p194 = scmp.eq.s32.totalorder %s20, 7
      %p195 = por %p193, %p194
      %p196 = scmp.ne.s32.totalorder %s188, %s191
      %p197 = scmp.eq.s32.totalorder %s20, 0
      %p198 = por %p196, %p197
      %p199 = scmp.ne.s32.totalorder %s188, %s191
      %p200 = scmp.eq.s32.totalorder %s25, 7
      %p201 = por %p199, %p200
      %p202 = scmp.ne.s32.totalorder %s191, %s192
      %p203 = scmp.eq.s32.totalorder %s25, 0
      %p204 = por %p202, %p203
      %p205 = scmp.ne.s32.totalorder %s191, %s192
      %p206 = scmp.eq.s32.totalorder %s26, 7
      %p207 = por %p205, %p206
      %p209 = scmp.ne.s32.totalorder %s192, %s208
      %p210 = scmp.eq.s32.totalorder %s26, 0
      %p211 = por %p209, %p210
      %s212 = ssub.s32 %s27, %s39
      %s213 = ssub.s32 %s28, %s35
      %s214 = sor.u32 %s212, %s213
      %p215 = scmp.eq.s32.totalorder %s214, 0
      %s217 = sadd.s32 %s216, 1
      %s218 = scalar_select %p215, %s216, %s217
      %p221 = pneg %p215
      %p222 = scmp.eq.s32.totalorder %s20, 7
      %p223 = por %p221, %p222
      %p224 = scmp.ne.s32.totalorder %s216, %s219
      %p225 = scmp.eq.s32.totalorder %s20, 0
      %p226 = por %p224, %p225
      %p227 = scmp.ne.s32.totalorder %s216, %s219
      %p228 = scmp.eq.s32.totalorder %s25, 7
      %p229 = por %p227, %p228
      %p230 = scmp.ne.s32.totalorder %s219, %s220
      %p231 = scmp.eq.s32.totalorder %s25, 0
      %p232 = por %p230, %p231
      %p233 = scmp.ne.s32.totalorder %s219, %s220
      %p234 = scmp.eq.s32.totalorder %s26, 7
      %p235 = por %p233, %p234
      %p237 = scmp.ne.s32.totalorder %s220, %s236
      %p238 = scmp.eq.s32.totalorder %s26, 0
      %p239 = por %p237, %p238
      %p240 = scmp.le.s32.totalorder 1, %s20
      %p241 = scmp.lt.s32.totalorder %s20, 9
      %p242 = pnand %p240, %p241
      %p243 = pneg %p242
      // Predicated region
      $region9: #{tpu_custom_call.1} parent=5 // pred_check
        _
      $region10: #{tpu_custom_call.1} parent=5 // pred_check_branch
        %245 = sbr.rel (%p242) target = $region12
      $region11: #{tpu_custom_call.1} parent=5 // pred_region
        %s246 = ssub.s32 %s20, 1
        // Predicated region
        $region13: #{tpu_custom_call.1} parent=11 // pred_check
          %p247 = pneg %p157
        $region14: #{tpu_custom_call.1} parent=11 // pred_check_branch
          %249 = sbr.rel (%p247) target = $region16
        $region15: #{tpu_custom_call.1} parent=11 // pred_region
          _
        $region16: #{tpu_custom_call.1} parent=11 // pred_fallthru
          _
        // Predicated region
        $region17: #{tpu_custom_call.1} parent=11 // pred_check
          %p250 = pneg %p178
        $region18: #{tpu_custom_call.1} parent=11 // pred_check_branch
          %252 = sbr.rel (%p250) target = $region20
        $region19: #{tpu_custom_call.1} parent=11 // pred_region
          _
        $region20: #{tpu_custom_call.1} parent=11 // pred_fallthru
          _
      $region12: #{tpu_custom_call.1} parent=5 // pred_fallthru
        _
      %p253 = scmp.lt.s32.totalorder %s20, 8
      // Predicated region
      $region21: #{tpu_custom_call.1} parent=5 // pred_check
        %p254 = pneg %p253
      $region22: #{tpu_custom_call.1} parent=5 // pred_check_branch
        %256 = sbr.rel (%p254) target = $region24
      $region23: #{tpu_custom_call.1} parent=5 // pred_region
        // Predicated region
        $region25: #{tpu_custom_call.1} parent=23 // pred_check
          %p257 = pneg %p52
        $region26: #{tpu_custom_call.1} parent=23 // pred_check_branch
          %259 = sbr.rel (%p257) target = $region28
        $region27: #{tpu_custom_call.1} parent=23 // pred_region
          %p260 = scmp.lt.s32.totalorder %s27, 1
          %s261 = scalar_select %p260, %s27, 1
          %s262 = smul.addr %s261, 8
          %s263 = scalar_lea.vmem %s0, %s262
        $region28: #{tpu_custom_call.1} parent=23 // pred_fallthru
          _
        // Predicated region
        $region29: #{tpu_custom_call.1} parent=23 // pred_check
          %p264 = pneg %p78
        $region30: #{tpu_custom_call.1} parent=23 // pred_check_branch
          %266 = sbr.rel (%p264) target = $region32
        $region31: #{tpu_custom_call.1} parent=23 // pred_region
          %p267 = scmp.lt.s32.totalorder %s28, 3
          %s268 = scalar_select %p267, %s28, 3
          %s269 = smul.addr %s268, 4
          %s270 = smul.addr %s269, 4
          %s271 = scalar_lea.vmem %s1, %s270
        $region32: #{tpu_custom_call.1} parent=23 // pred_fallthru
          _
        // Predicated region
        $region33: #{tpu_custom_call.1} parent=23 // pred_check
          %p272 = pneg %p104
        $region34: #{tpu_custom_call.1} parent=23 // pred_check_branch
          %274 = sbr.rel (%p272) target = $region36
        $region35: #{tpu_custom_call.1} parent=23 // pred_region
          %p275 = scmp.lt.s32.totalorder %s28, 3
          %s276 = scalar_select %p275, %s28, 3
          %s277 = smul.addr %s276, 4
          %s278 = smul.addr %s277, 4
          %s279 = scalar_lea.vmem %s2, %s278
        $region36: #{tpu_custom_call.1} parent=23 // pred_fallthru
          _
        // Predicated region
        $region37: #{tpu_custom_call.1} parent=23 // pred_check
          %p280 = pneg %p130
        $region38: #{tpu_custom_call.1} parent=23 // pred_check_branch
          %282 = sbr.rel (%p280) target = $region40
        $region39: #{tpu_custom_call.1} parent=23 // pred_region
          %p283 = scmp.lt.s32.totalorder %s28, 3
          %s284 = scalar_select %p283, %s28, 3
          %s285 = smul.addr %s284, 4
          %s286 = smul.addr %s285, 4
          %s287 = scalar_lea.vmem %s3, %s286
        $region40: #{tpu_custom_call.1} parent=23 // pred_fallthru
          _
      $region24: #{tpu_custom_call.1} parent=5 // pred_fallthru
        _
      %p288 = scmp.le.s32.totalorder 1, %s20
      %p289 = scmp.lt.s32.totalorder %s20, 9
      %p290 = pnand %p288, %p289
      %p291 = pneg %p290
      // Predicated region
      $region41: #{tpu_custom_call.1} parent=5 // pred_check
        _
      $region42: #{tpu_custom_call.1} parent=5 // pred_check_branch
        %293 = sbr.rel (%p290) target = $region44
      $region43: #{tpu_custom_call.1} parent=5 // pred_region
        %s294 = ssub.s32 %s20, 1
        %p295 = scmp.lt.s32.totalorder %s29, 1
        %s296 = scalar_select %p295, %s29, 1
        %s297 = smul.addr %s296, 8
        %s298 = scalar_lea.vmem %s0, %s297
        %p299 = pneg %p58
        %p300 = pneg %p55
        %p301 = scmp.lt.s32.totalorder %s30, 3
        %s302 = scalar_select %p301, %s30, 3
        %s303 = smul.addr %s302, 4
        %s304 = smul.addr %s303, 4
        %s305 = scalar_lea.vmem %s1, %s304
        %p306 = pneg %p84
        %p307 = pneg %p81
        %p308 = scmp.lt.s32.totalorder %s30, 3
        %s309 = scalar_select %p308, %s30, 3
        %s310 = smul.addr %s309, 4
        %s311 = smul.addr %s310, 4
        %s312 = scalar_lea.vmem %s2, %s311
        %p313 = pneg %p110
        %p314 = pneg %p107
        %p315 = scmp.lt.s32.totalorder %s30, 3
        %s316 = scalar_select %p315, %s30, 3
        %s317 = smul.addr %s316, 4
        %s318 = smul.addr %s317, 4
        %s319 = scalar_lea.vmem %s3, %s318
        %p320 = pneg %p136
        %p321 = pneg %p133
        %p322 = pneg %p157
        %p323 = pneg %p154
        %p324 = pneg %p178
        %p325 = pneg %p175
        %p326 = pneg %p204
        %p327 = pneg %p201
        %s328 = sand.u32 %s191, 1
        %s329 = scalar_lea.sflag [#allocation4], %s328
        %s330 = sand.u32 %s191, 1
        %s331 = smul.addr %s330, 8
        %s332 = scalar_lea.vmem [#allocation3], %s331
        %p333 = pneg %p232
        %p334 = pneg %p229
        %s335 = sand.u32 %s219, 1
        %s336 = scalar_lea.sflag [#allocation6], %s335
        %s337 = sand.u32 %s219, 1
        %s338 = smul.addr %s337, 8
        %s339 = scalar_lea.vmem [#allocation5], %s338
        %p340 = scmp.lt.s32.totalorder %s29, 1
        %s341 = scalar_select %p340, %s29, 1
        %s342 = smul.addr %s341, 8
        %s343 = scalar_lea.vmem %s0, %s342
        %p344 = scmp.lt.s32.totalorder %s30, 3
        %s345 = scalar_select %p344, %s30, 3
        %s346 = smul.addr %s345, 4
        %s347 = smul.addr %s346, 4
        %s348 = scalar_lea.vmem %s1, %s347
        %p349 = scmp.lt.s32.totalorder %s30, 3
        %s350 = scalar_select %p349, %s30, 3
        %s351 = smul.addr %s350, 4
        %s352 = smul.addr %s351, 4
        %s353 = scalar_lea.vmem %s2, %s352
        %p354 = scmp.lt.s32.totalorder %s30, 3
        %s355 = scalar_select %p354, %s30, 3
        %s356 = smul.addr %s355, 4
        %s357 = smul.addr %s356, 4
        %s358 = scalar_lea.vmem %s3, %s357
        %v360 = vld [vmem:[%s343] sm:$0xff]
        %v361 = vpack.c.bf16 %v360, %v360
        %v362 = vld [vmem:[%s348] sm:$0xf]
        %v363 = vld [vmem:[%s348 + $0x4] sm:$0xf]
        %v364 = vld [vmem:[%s348 + $0x8] sm:$0xf]
        %v365 = vld [vmem:[%s348 + $0xc] sm:$0xf]
        %v370 = vunpack.c.l.b16 %v362
        %v371 = vunpack.c.l.b16 %v363
        %v372 = vunpack.c.l.b16 %v364
        %v373 = vunpack.c.l.b16 %v365
        %v374 = vpack.c.b16 %v371, %v370
        %v375 = vpack.c.b16 %v373, %v372
        %vm378 = vcmask 261120
        %v380 = vsel %vm378, %v361, 0
        %382 = vmatpush.bf16.msra.mxu0 0
        %383 = vmatpush.bf16.msra.mxu0 0
        %384 = vmatpush.bf16.msra.mxu0 0
        %385 = vmatpush.bf16.msra.mxu0 0
        %386 = vmatpush.bf16.msra.mxu0 0
        %387 = vmatpush.bf16.msra.mxu0 0
        %388 = vmatpush.bf16.msra.mxu0 %v375
        %389 = vmatpush.bf16.msra.mxu0 %v374
        %390 = vmatmul.bf16.gmra.mxu0 %v380
        %v391 = vpop.f32.mrf.mxu0
        %v392 = vadd.f32 0.0, %v391
        %v393 = vpop.f32.mrf.mxu0
        %394 = vdwg.mxu0
        %v395 = vld [vmem:[%s353] sm:$0xf]
        %v396 = vld [vmem:[%s353 + $0x4] sm:$0xf]
        %v397 = vld [vmem:[%s353 + $0x8] sm:$0xf]
        %v398 = vld [vmem:[%s353 + $0xc] sm:$0xf]
        %v403 = vunpack.c.l.b16 %v395
        %v404 = vunpack.c.l.b16 %v396
        %v405 = vunpack.c.l.b16 %v397
        %v406 = vunpack.c.l.b16 %v398
        %v407 = vpack.c.b16 %v404, %v403
        %v408 = vpack.c.b16 %v406, %v405
        %411 = vmatpush.bf16.msra.mxu0 0
        %412 = vmatpush.bf16.msra.mxu0 0
        %413 = vmatpush.bf16.msra.mxu0 0
        %414 = vmatpush.bf16.msra.mxu0 0
        %415 = vmatpush.bf16.msra.mxu0 0
        %416 = vmatpush.bf16.msra.mxu0 0
        %417 = vmatpush.bf16.msra.mxu0 %v408
        %418 = vmatpush.bf16.msra.mxu0 %v407
        %419 = vmatmul.bf16.gmra.mxu0 %v380
        %v420 = vpop.f32.mrf.mxu0
        %v421 = vadd.f32 0.0, %v420
        %v422 = vpop.f32.mrf.mxu0
        %423 = vdwg.mxu0
        %v424 = vld [vmem:[%s358] sm:$0xf]
        %v425 = vld [vmem:[%s358 + $0x4] sm:$0xf]
        %v426 = vld [vmem:[%s358 + $0x8] sm:$0xf]
        %v427 = vld [vmem:[%s358 + $0xc] sm:$0xf]
        %v432 = vunpack.c.l.b16 %v424
        %v433 = vunpack.c.l.b16 %v425
        %v434 = vunpack.c.l.b16 %v426
        %v435 = vunpack.c.l.b16 %v427
        %v436 = vpack.c.b16 %v433, %v432
        %v437 = vpack.c.b16 %v435, %v434
        %440 = vmatpush.bf16.msra.mxu0 0
        %441 = vmatpush.bf16.msra.mxu0 0
        %442 = vmatpush.bf16.msra.mxu0 0
        %443 = vmatpush.bf16.msra.mxu0 0
        %444 = vmatpush.bf16.msra.mxu0 0
        %445 = vmatpush.bf16.msra.mxu0 0
        %446 = vmatpush.bf16.msra.mxu0 %v437
        %447 = vmatpush.bf16.msra.mxu0 %v436
        %448 = vmatmul.bf16.gmra.mxu0 %v380
        %v449 = vpop.f32.mrf.mxu0
        %v450 = vadd.f32 0.0, %v449
        %v451 = vpop.f32.mrf.mxu0
        %452 = vdwg.mxu0
        %v453 = vpack.c.bf16 %v450, %v450
        %v454 = vpack.c.bf16 %v392, %v392
        %v455 = vpack.c.bf16 %v421, %v421
        %vm456 = vcmask 64512
        %v458 = vsel %vm456, %v454, 0
        %v461 = vsel %vm456, %v455, 0
        %463 = vmatpush.bf16.xpose.msra.mxu0 0
        %464 = vmatpush.bf16.xpose.msra.mxu0 0
        %465 = vmatpush.bf16.xpose.msra.mxu0 0
        %466 = vmatpush.bf16.xpose.msra.mxu0 0
        %467 = vmatpush.bf16.xpose.msra.mxu0 0
        %468 = vmatpush.bf16.xpose.msra.mxu0 0
        %469 = vmatpush.bf16.xpose.msra.mxu0 0
        %470 = vmatpush.bf16.xpose.msra.mxu0 %v461
        %471 = vmatmul.bf16.gmra.mxu0 %v458
        %v472 = vpop.f32.mrf.mxu0
        %v473 = vadd.f32 0.0, %v472
        %v474 = vpop.f32.mrf.mxu0
        %475 = vdwg.mxu0
        %v476 = vsel %vm456, %v473, -inf
        %477 = vmax.xlane.f32.xlu0 %v476
        %v478 = vpop.xlane.xlu0 %477
        %v479 = vsub.f32 %v473, %v478
        %v480 = vmul.f32 %v479, 1.442695
        %v481 = vpow.pop %v480
        %v482 = vsel %vm456, %v481, 0.0
        %483 = vadd.xlane.f32.xlu0 %v482
        %v484 = vpop.xlane.xlu0 %483
        %v485 = vrcp.pop %v484
        %v486 = vmul.f32 %v484, %v485
        %v487 = vsub.f32 1.0, %v486
        %v488 = vmul.f32 %v485, %v487
        %v489 = vadd.f32 %v485, %v488
        %vm490 = vweird.f32 %v484
        %vm491 = vweird.f32 %v485
        %vm492 = vmor %vm490, %vm491
        %v493 = vsel %vm492, %v485, %v489
        %v494 = vand.u32 2147483647, %v484
        %vm495 = vcmp.eq.f32.partialorder %v494, 8.507059e+37
        %v496 = vand.u32 %v484, 2147483648
        %v497 = vor.u32 1.1754944e-38, %v496
        %v498 = vsel %vm495, %v497, %v493
        %v499 = vmul.f32 1.0, %v498
        %v500 = vmul.f32 %v481, %v499
        %501 = vst.msk [vmem:[%s339] sm:$0xff] %vm456, %v500
        %v502 = vpack.c.bf16 %v500, %v500
        %v504 = vsel %vm456, %v502, 0
        %vm506 = vcmask 1043456
        %v508 = vsel %vm506, %v453, 0
        %510 = vmatpush.bf16.msra.mxu0 0
        %511 = vmatpush.bf16.msra.mxu0 0
        %512 = vmatpush.bf16.msra.mxu0 0
        %513 = vmatpush.bf16.msra.mxu0 0
        %514 = vmatpush.bf16.msra.mxu0 0
        %515 = vmatpush.bf16.msra.mxu0 0
        %516 = vmatpush.bf16.msra.mxu0 0
        %517 = vmatpush.bf16.msra.mxu0 %v508
        %518 = vmatmul.bf16.gmra.mxu0 %v504
        %v519 = vpop.f32.mrf.mxu0
        %v520 = vadd.f32 0.0, %v519
        %v521 = vpop.f32.mrf.mxu0
        %522 = vdwg.mxu0
        %v523 = vpack.c.bf16 %v520, %v520
        %p524 = scmp.eq.s32.totalorder %s30, 0
        // Predicated region
        $region45: #{tpu_custom_call.1} parent=43 // pred_check
          %p525 = pneg %p524
        $region46: #{tpu_custom_call.1} parent=43 // pred_check_branch
          %527 = sbr.rel (%p525) target = $region48
        $region47: #{tpu_custom_call.1} parent=43 // pred_region
          %vm528 = vcmask 60416
          %529 = vst.msk [vmem:[#allocation2] sm:$0xf] %vm528, %v523
        $region48: #{tpu_custom_call.1} parent=43 // pred_fallthru
          _
        %p530 = scmp.eq.s32.totalorder %s30, 1
        // Predicated region
        $region49: #{tpu_custom_call.1} parent=43 // pred_check
          %p531 = pneg %p530
        $region50: #{tpu_custom_call.1} parent=43 // pred_check_branch
          %533 = sbr.rel (%p531) target = $region52
        $region51: #{tpu_custom_call.1} parent=43 // pred_region
          %535 = vrot.lane.b32.xlu0 %v523, 8
          %v536 = vpop.permute.xlu0 %535
          %vm538 = vcmask 126016
          %539 = vst.msk [vmem:[#allocation2] sm:$0xf] %vm538, %v536
        $region52: #{tpu_custom_call.1} parent=43 // pred_fallthru
          _
        %p540 = scmp.eq.s32.totalorder %s30, 2
        // Predicated region
        $region53: #{tpu_custom_call.1} parent=43 // pred_check
          %p541 = pneg %p540
        $region54: #{tpu_custom_call.1} parent=43 // pred_check_branch
          %543 = sbr.rel (%p541) target = $region56
        $region55: #{tpu_custom_call.1} parent=43 // pred_region
          %545 = vrot.lane.b32.xlu0 %v523, 16
          %v546 = vpop.permute.xlu0 %545
          %vm548 = vcmask 191616
          %549 = vst.msk [vmem:[#allocation2] sm:$0xf] %vm548, %v546
        $region56: #{tpu_custom_call.1} parent=43 // pred_fallthru
          _
        %p550 = scmp.eq.s32.totalorder %s30, 3
        // Predicated region
        $region57: #{tpu_custom_call.1} parent=43 // pred_check
          %p551 = pneg %p550
        $region58: #{tpu_custom_call.1} parent=43 // pred_check_branch
          %553 = sbr.rel (%p551) target = $region60
        $region59: #{tpu_custom_call.1} parent=43 // pred_region
          %555 = vrot.lane.b32.xlu0 %v523, 24
          %v556 = vpop.permute.xlu0 %555
          %vm558 = vcmask 257216
          %559 = vst.msk [vmem:[#allocation2] sm:$0xf] %vm558, %v556
          %v560 = vld [vmem:[#allocation2] sm:$0xf]
          %v561 = vld [vmem:[%s4] sm:$0xf]
          %v562 = vld [vmem:[%s4 + $0x4] sm:$0xf]
          %v563 = vld [vmem:[%s4 + $0x8] sm:$0xf]
          %v564 = vld [vmem:[%s4 + $0xc] sm:$0xf]
          %v565 = vld [vmem:[%s5] sm:$0x1]
          %v567 = vperm.slane %v565, 0
          %v573 = vunpack.c.l.b16 %v561
          %v574 = vunpack.c.l.b16 %v562
          %v575 = vunpack.c.l.b16 %v563
          %v576 = vunpack.c.l.b16 %v564
          %v577 = vpack.c.b16 %v574, %v573
          %v578 = vpack.c.b16 %v576, %v575
          %v582 = vsel %vm378, %v560, 0
          %584 = vmatpush.bf16.msra.mxu0 0
          %585 = vmatpush.bf16.msra.mxu0 0
          %586 = vmatpush.bf16.msra.mxu0 0
          %587 = vmatpush.bf16.msra.mxu0 0
          %588 = vmatpush.bf16.msra.mxu0 0
          %589 = vmatpush.bf16.msra.mxu0 0
          %590 = vmatpush.bf16.msra.mxu0 %v578
          %591 = vmatpush.bf16.msra.mxu0 %v577
          %592 = vmatmul.bf16.gmra.mxu0 %v582
          %v593 = vpop.f32.mrf.mxu0
          %v594 = vadd.f32 %v567, %v593
          %v595 = vpop.f32.mrf.mxu0
          %596 = vdwg.mxu0
          %597 = vst.msk [vmem:[%s332] sm:$0xff] %vm378, %v594
        $region60: #{tpu_custom_call.1} parent=43 // pred_fallthru
          _
        %s598 = sand.u32 %s191, 1
        %s599 = scalar_lea.sflag [#allocation4], %s598
        %s600 = sand.u32 %s191, 1
        %s601 = smul.addr %s600, 8
        %s602 = scalar_lea.vmem [#allocation3], %s601
        %s603 = sand.u32 %s219, 1
        %s604 = scalar_lea.sflag [#allocation6], %s603
        %s605 = sand.u32 %s219, 1
        %s606 = smul.addr %s605, 8
        %s607 = scalar_lea.vmem [#allocation5], %s606
        // Predicated region
        $region61: #{tpu_custom_call.1} parent=43 // pred_check
          %p608 = pneg %p201
        $region62: #{tpu_custom_call.1} parent=43 // pred_check_branch
          %610 = sbr.rel (%p608) target = $region64
        $region63: #{tpu_custom_call.1} parent=43 // pred_region
          %612 = vsyncadd %s599, 0
          %s613 = smul.addr %s29, 8
          %s614 = scalar_lea.hbm %s6, %s613
          %s616 = sshll.u32 %s602, 4
          %s617 = int_to_ptr.vmem [resolvable:$true] %s616
          %s618 = sshll.u32 %s614, 4
          %s619 = int_to_ptr.hbm [resolvable:$true] %s618
          %621 = dma.vmem_to_hbm [thread:$0]  %s617, 128, %s619, %s599
        $region64: #{tpu_custom_call.1} parent=43 // pred_fallthru
          _
        // Predicated region
        $region65: #{tpu_custom_call.1} parent=43 // pred_check
          %p622 = pneg %p229
        $region66: #{tpu_custom_call.1} parent=43 // pred_check_branch
          %624 = sbr.rel (%p622) target = $region68
        $region67: #{tpu_custom_call.1} parent=43 // pred_region
          %626 = vsyncadd %s604, 0
          %s627 = smul.addr %s29, 4
          %s628 = sadd.s32 %s30, %s627
          %s629 = smul.addr %s628, 8
          %s630 = scalar_lea.hbm %s7, %s629
          %s632 = sshll.u32 %s607, 4
          %s633 = int_to_ptr.vmem [resolvable:$true] %s632
          %s634 = sshll.u32 %s630, 4
          %s635 = int_to_ptr.hbm [resolvable:$true] %s634
          %637 = dma.vmem_to_hbm [thread:$0]  %s633, 128, %s635, %s604
        $region68: #{tpu_custom_call.1} parent=43 // pred_fallthru
          _
      $region44: #{tpu_custom_call.1} parent=5 // pred_fallthru
        _
      %p638 = scmp.le.s32.totalorder 2, %s20
      // Predicated region
      $region69: #{tpu_custom_call.1} parent=5 // pred_check
        %p639 = pneg %p638
      $region70: #{tpu_custom_call.1} parent=5 // pred_check_branch
        %641 = sbr.rel (%p639) target = $region72
      $region71: #{tpu_custom_call.1} parent=5 // pred_region
        %s642 = ssub.s32 %s20, 2
        // Predicated region
        $region73: #{tpu_custom_call.1} parent=71 // pred_check
          %p643 = pneg %p207
        $region74: #{tpu_custom_call.1} parent=71 // pred_check_branch
          %645 = sbr.rel (%p643) target = $region76
        $region75: #{tpu_custom_call.1} parent=71 // pred_region
          %s646 = sand.u32 %s192, 1
          %s647 = scalar_lea.sflag [#allocation4], %s646
          %s648 = sand.u32 %s192, 1
          %s649 = smul.addr %s648, 8
          %s650 = scalar_lea.vmem [#allocation3], %s649
          %652 = dma.done %s647, 128
        $region76: #{tpu_custom_call.1} parent=71 // pred_fallthru
          _
        // Predicated region
        $region77: #{tpu_custom_call.1} parent=71 // pred_check
          %p653 = pneg %p235
        $region78: #{tpu_custom_call.1} parent=71 // pred_check_branch
          %655 = sbr.rel (%p653) target = $region80
        $region79: #{tpu_custom_call.1} parent=71 // pred_region
          %s656 = sand.u32 %s220, 1
          %s657 = scalar_lea.sflag [#allocation6], %s656
          %s658 = sand.u32 %s220, 1
          %s659 = smul.addr %s658, 8
          %s660 = scalar_lea.vmem [#allocation5], %s659
          %662 = dma.done %s657, 128
        $region80: #{tpu_custom_call.1} parent=71 // pred_fallthru
          _
      $region72: #{tpu_custom_call.1} parent=5 // pred_fallthru
        _
    $region6: #{tpu_custom_call.1} parent=1 // loop_footer
      %s24 = sadd.s32 1, %s20
    $region7: #{tpu_custom_call.1} parent=1 // loop_footer_branch
      %19 = sbr.rel target = $region3
    $region8: #{tpu_custom_call.1} parent=1 // loop_exit
      _
    %663 = vsyncpa [#allocation4], 1
    %s664 = scalar_lea.sflag [#allocation4], 1
    %665 = vsyncpa %s664, 1
    %666 = vsyncpa [#allocation6], 1
    %s667 = scalar_lea.sflag [#allocation6], 1
    %668 = vsyncpa %s667, 1

// kernel: tpu_custom_call.1
$region0: #{tpu_custom_call.1}
  #allocation0 [shape = 'u32[]', space=smem, size = 0x4, offset = 0x4, fixed_abs, tag = 'smem constant byte address 0x4 - core index']
  #allocation1 [shape = 'u32[72,128]{1,0:T(1,128)}', space=vmem, size = 0x9000, scoped, tag = 'internal scratch']
  #allocation2 [shape = 'bf16[8,32]{1,0:T(8,128)(2,1)}', space=vmem, size = 0x800, scoped, tag = 'scratch operand']
  %s0 = inlined_call_operand.vmem [shape: f32[2,8,32], index: 0, kind: input, shape index: {}]
  %s1 = inlined_call_operand.vmem [shape: bf16[4,32,8], index: 1, kind: input, shape index: {}]
  %s2 = inlined_call_operand.vmem [shape: bf16[4,32,8], index: 2, kind: input, shape index: {}]
  %s3 = inlined_call_operand.vmem [shape: bf16[4,32,8], index: 3, kind: input, shape index: {}]
  %s4 = inlined_call_operand.vmem [shape: bf16[32,32], index: 4, kind: input, shape index: {}]
  %s5 = inlined_call_operand.vmem [shape: f32[1,32], index: 5, kind: input, shape index: {}]
  %s6 = inlined_call_operand.hbm [shape: f32[2,8,32], index: 6, kind: output, shape index: {0}]
  %s7 = inlined_call_operand.hbm [shape: f32[2,4,8,8], index: 7, kind: output, shape index: {1}]
  %8 = xla_tuple %s6, %s7
  %s9 = sld [smem:[#allocation0]]
  $region81: #{tpu_custom_call.1} parent=0
    _
  %s11 = ssub.s32 1, %s9
  %s12 = scalar_select 0, %s11, %s9
  $region1: #{tpu_custom_call.1} parent=0
    #allocation3 [shape = 'u8[8192]{0}', space=vmem, size = 0x2000, scoped, tag = 'output window, operand 0']
    #allocation4 [shape = 's32[2]{0}', space=sflag, size = 0x8, scoped, tag = 'scoped memory for tpu_custom_call.1']
    #allocation5 [shape = 'u8[8192]{0}', space=vmem, size = 0x2000, scoped, tag = 'output window, operand 1']
    #allocation6 [shape = 's32[2]{0}', space=sflag, size = 0x8, scoped, tag = 'scoped memory for tpu_custom_call.1']
    %13 = vsyncpa [#allocation4], 0
    %s14 = scalar_lea.sflag [#allocation4], 1
    %15 = vsyncpa %s14, 0
    %16 = vsyncpa [#allocation6], 0
    %s17 = scalar_lea.sflag [#allocation6], 1
    %18 = vsyncpa %s17, 0
    loop: start=0, step=1, limit=10
    $region2: #{tpu_custom_call.1} parent=1 // loop_pre_header
      _
    $region3: #{tpu_custom_call.1} parent=1 // loop_header
      %s20 = sphi 0, %s24
      %p21 = scmp.ge.s32.totalorder %s20, 10
      %s27 = sphi 0, %s39
      %s28 = sphi 0, %s35
      %s29 = sphi 0, %s27
      %s30 = sphi 0, %s28
      %s31 = sphi 0, %s29
      %s32 = sphi 0, %s30
      %s42 = sphi 0, %s44
      %s45 = sphi 0, %s42
      %s46 = sphi 0, %s45
      %s62 = sphi 0, %s46
      %s68 = sphi 0, %s70
      %s71 = sphi 0, %s68
      %s72 = sphi 0, %s71
      %s88 = sphi 0, %s72
      %s94 = sphi 0, %s96
      %s97 = sphi 0, %s94
      %s98 = sphi 0, %s97
      %s114 = sphi 0, %s98
      %s120 = sphi 0, %s122
      %s123 = sphi 0, %s120
      %s124 = sphi 0, %s123
      %s140 = sphi 0, %s124
      %s144 = sphi 0, %s144
      %s146 = sphi 0, %s144
      %s147 = sphi 0, %s146
      %s161 = sphi 0, %s147
      %s165 = sphi 0, %s165
      %s167 = sphi 0, %s165
      %s168 = sphi 0, %s167
      %s182 = sphi 0, %s168
      %s188 = sphi 0, %s190
      %s191 = sphi 0, %s188
      %s192 = sphi 0, %s191
      %s208 = sphi 0, %s192
      %s216 = sphi 0, %s218
      %s219 = sphi 0, %s216
      %s220 = sphi 0, %s219
      %s236 = sphi 0, %s220
    $region4: #{tpu_custom_call.1} parent=1 // loop_header_branch
      %23 = sbr.rel (%p21) target = $region8
    $region5: #{tpu_custom_call.1} parent=1 // loop_body
      %s25 = ssub.s32 %s20, 1
      %s26 = ssub.s32 %s20, 2
      %s33 = sadd.s32 1, %s28
      %p34 = scmp.ge.s32.totalorder %s33, 4
      %s35 = scalar_select %p34, 0, %s33
      %s36 = sadd.s32 1, %s27
      %s37 = scalar_select %p34, %s36, %s27
      %p38 = scmp.ge.s32.totalorder %s37, 2
      %s39 = scalar_select %p38, 0, %s37
      %s40 = ssub.s32 %s27, %s39
      %p41 = scmp.eq.s32.totalorder %s40, 0
      %s43 = sadd.s32 %s42, 1
      %s44 = scalar_select %p41, %s42, %s43
      %p47 = pneg %p41
      %p48 = scmp.eq.s32.totalorder %s20, 7
      %p49 = por %p47, %p48
      %p50 = scmp.ne.s32.totalorder %s42, %s45
      %p51 = scmp.eq.s32.totalorder %s20, 0
      %p52 = por %p50, %p51
      %p53 = scmp.ne.s32.totalorder %s42, %s45
      %p54 = scmp.eq.s32.totalorder %s25, 7
      %p55 = por %p53, %p54
      %p56 = scmp.ne.s32.totalorder %s45, %s46
      %p57 = scmp.eq.s32.totalorder %s25, 0
      %p58 = por %p56, %p57
      %p59 = scmp.ne.s32.totalorder %s45, %s46
      %p60 = scmp.eq.s32.totalorder %s26, 7
      %p61 = por %p59, %p60
      %p63 = scmp.ne.s32.totalorder %s46, %s62
      %p64 = scmp.eq.s32.totalorder %s26, 0
      %p65 = por %p63, %p64
      %s66 = ssub.s32 %s28, %s35
      %p67 = scmp.eq.s32.totalorder %s66, 0
      %s69 = sadd.s32 %s68, 1
      %s70 = scalar_select %p67, %s68, %s69
      %p73 = pneg %p67
      %p74 = scmp.eq.s32.totalorder %s20, 7
      %p75 = por %p73, %p74
      %p76 = scmp.ne.s32.totalorder %s68, %s71
      %p77 = scmp.eq.s32.totalorder %s20, 0
      %p78 = por %p76, %p77
      %p79 = scmp.ne.s32.totalorder %s68, %s71
      %p80 = scmp.eq.s32.totalorder %s25, 7
      %p81 = por %p79, %p80
      %p82 = scmp.ne.s32.totalorder %s71, %s72
      %p83 = scmp.eq.s32.totalorder %s25, 0
      %p84 = por %p82, %p83
      %p85 = scmp.ne.s32.totalorder %s71, %s72
      %p86 = scmp.eq.s32.totalorder %s26, 7
      %p87 = por %p85, %p86
      %p89 = scmp.ne.s32.totalorder %s72, %s88
      %p90 = scmp.eq.s32.totalorder %s26, 0
      %p91 = por %p89, %p90
      %s92 = ssub.s32 %s28, %s35
      %p93 = scmp.eq.s32.totalorder %s92, 0
      %s95 = sadd.s32 %s94, 1
      %s96 = scalar_select %p93, %s94, %s95
      %p99 = pneg %p93
      %p100 = scmp.eq.s32.totalorder %s20, 7
      %p101 = por %p99, %p100
      %p102 = scmp.ne.s32.totalorder %s94, %s97
      %p103 = scmp.eq.s32.totalorder %s20, 0
      %p104 = por %p102, %p103
      %p105 = scmp.ne.s32.totalorder %s94, %s97
      %p106 = scmp.eq.s32.totalorder %s25, 7
      %p107 = por %p105, %p106
      %p108 = scmp.ne.s32.totalorder %s97, %s98
      %p109 = scmp.eq.s32.totalorder %s25, 0
      %p110 = por %p108, %p109
      %p111 = scmp.ne.s32.totalorder %s97, %s98
      %p112 = scmp.eq.s32.totalorder %s26, 7
      %p113 = por %p111, %p112
      %p115 = scmp.ne.s32.totalorder %s98, %s114
      %p116 = scmp.eq.s32.totalorder %s26, 0
      %p117 = por %p115, %p116
      %s118 = ssub.s32 %s28, %s35
      %p119 = scmp.eq.s32.totalorder %s118, 0
      %s121 = sadd.s32 %s120, 1
      %s122 = scalar_select %p119, %s120, %s121
      %p125 = pneg %p119
      %p126 = scmp.eq.s32.totalorder %s20, 7
      %p127 = por %p125, %p126
      %p128 = scmp.ne.s32.totalorder %s120, %s123
      %p129 = scmp.eq.s32.totalorder %s20, 0
      %p130 = por %p128, %p129
      %p131 = scmp.ne.s32.totalorder %s120, %s123
      %p132 = scmp.eq.s32.totalorder %s25, 7
      %p133 = por %p131, %p132
      %p134 = scmp.ne.s32.totalorder %s123, %s124
      %p135 = scmp.eq.s32.totalorder %s25, 0
      %p136 = por %p134, %p135
      %p137 = scmp.ne.s32.totalorder %s123, %s124
      %p138 = scmp.eq.s32.totalorder %s26, 7
      %p139 = por %p137, %p138
      %p141 = scmp.ne.s32.totalorder %s124, %s140
      %p142 = scmp.eq.s32.totalorder %s26, 0
      %p143 = por %p141, %p142
      %s145 = sadd.s32 %s144, 1
      %p148 = scmp.eq.s32.totalorder %s20, 7
      %p149 = scmp.ne.s32.totalorder %s144, %s146
      %p150 = scmp.eq.s32.totalorder %s20, 0
      %p151 = por %p149, %p150
      %p152 = scmp.ne.s32.totalorder %s144, %s146
      %p153 = scmp.eq.s32.totalorder %s25, 7
      %p154 = por %p152, %p153
      %p155 = scmp.ne.s32.totalorder %s146, %s147
      %p156 = scmp.eq.s32.totalorder %s25, 0
      %p157 = por %p155, %p156
      %p158 = scmp.ne.s32.totalorder %s146, %s147
      %p159 = scmp.eq.s32.totalorder %s26, 7
      %p160 = por %p158, %p159
      %p162 = scmp.ne.s32.totalorder %s147, %s161
      %p163 = scmp.eq.s32.totalorder %s26, 0
      %p164 = por %p162, %p163
      %s166 = sadd.s32 %s165, 1
      %p169 = scmp.eq.s32.totalorder %s20, 7
      %p170 = scmp.ne.s32.totalorder %s165, %s167
      %p171 = scmp.eq.s32.totalorder %s20, 0
      %p172 = por %p170, %p171
      %p173 = scmp.ne.s32.totalorder %s165, %s167
      %p174 = scmp.eq.s32.totalorder %s25, 7
      %p175 = por %p173, %p174
      %p176 = scmp.ne.s32.totalorder %s167, %s168
      %p177 = scmp.eq.s32.totalorder %s25, 0
      %p178 = por %p176, %p177
      %p179 = scmp.ne.s32.totalorder %s167, %s168
      %p180 = scmp.eq.s32.totalorder %s26, 7
      %p181 = por %p179, %p180
      %p183 = scmp.ne.s32.totalorder %s168, %s182
      %p184 = scmp.eq.s32.totalorder %s26, 0
      %p185 = por %p183, %p184
      %s186 = ssub.s32 %s27, %s39
      %p187 = scmp.eq.s32.totalorder %s186, 0
      %s189 = sadd.s32 %s188, 1
      %s190 = scalar_select %p187, %s188, %s189
      %p193 = pneg %p187
      %p194 = scmp.eq.s32.totalorder %s20, 7
      %p195 = por %p193, %p194
      %p196 = scmp.ne.s32.totalorder %s188, %s191
      %p197 = scmp.eq.s32.totalorder %s20, 0
      %p198 = por %p196, %p197
      %p199 = scmp.ne.s32.totalorder %s188, %s191
      %p200 = scmp.eq.s32.totalorder %s25, 7
      %p201 = por %p199, %p200
      %p202 = scmp.ne.s32.totalorder %s191, %s192
      %p203 = scmp.eq.s32.totalorder %s25, 0
      %p204 = por %p202, %p203
      %p205 = scmp.ne.s32.totalorder %s191, %s192
      %p206 = scmp.eq.s32.totalorder %s26, 7
      %p207 = por %p205, %p206
      %p209 = scmp.ne.s32.totalorder %s192, %s208
      %p210 = scmp.eq.s32.totalorder %s26, 0
      %p211 = por %p209, %p210
      %s212 = ssub.s32 %s27, %s39
      %s213 = ssub.s32 %s28, %s35
      %s214 = sor.u32 %s212, %s213
      %p215 = scmp.eq.s32.totalorder %s214, 0
      %s217 = sadd.s32 %s216, 1
      %s218 = scalar_select %p215, %s216, %s217
      %p221 = pneg %p215
      %p222 = scmp.eq.s32.totalorder %s20, 7
      %p223 = por %p221, %p222
      %p224 = scmp.ne.s32.totalorder %s216, %s219
      %p225 = scmp.eq.s32.totalorder %s20, 0
      %p226 = por %p224, %p225
      %p227 = scmp.ne.s32.totalorder %s216, %s219
      %p228 = scmp.eq.s32.totalorder %s25, 7
      %p229 = por %p227, %p228
      %p230 = scmp.ne.s32.totalorder %s219, %s220
      %p231 = scmp.eq.s32.totalorder %s25, 0
      %p232 = por %p230, %p231
      %p233 = scmp.ne.s32.totalorder %s219, %s220
      %p234 = scmp.eq.s32.totalorder %s26, 7
      %p235 = por %p233, %p234
      %p237 = scmp.ne.s32.totalorder %s220, %s236
      %p238 = scmp.eq.s32.totalorder %s26, 0
      %p239 = por %p237, %p238
      %p240 = scmp.le.s32.totalorder 1, %s20
      %p241 = scmp.lt.s32.totalorder %s20, 9
      %p242 = pnand %p240, %p241
      %p243 = pneg %p242
      // Predicated region
      $region9: #{tpu_custom_call.1} parent=5 // pred_check
        _
      $region10: #{tpu_custom_call.1} parent=5 // pred_check_branch
        %245 = sbr.rel (%p242) target = $region12
      $region11: #{tpu_custom_call.1} parent=5 // pred_region
        %s246 = ssub.s32 %s20, 1
        // Predicated region
        $region13: #{tpu_custom_call.1} parent=11 // pred_check
          %p247 = pneg %p157
        $region14: #{tpu_custom_call.1} parent=11 // pred_check_branch
          %249 = sbr.rel (%p247) target = $region16
        $region15: #{tpu_custom_call.1} parent=11 // pred_region
          _
        $region16: #{tpu_custom_call.1} parent=11 // pred_fallthru
          _
        // Predicated region
        $region17: #{tpu_custom_call.1} parent=11 // pred_check
          %p250 = pneg %p178
        $region18: #{tpu_custom_call.1} parent=11 // pred_check_branch
          %252 = sbr.rel (%p250) target = $region20
        $region19: #{tpu_custom_call.1} parent=11 // pred_region
          _
        $region20: #{tpu_custom_call.1} parent=11 // pred_fallthru
          _
      $region12: #{tpu_custom_call.1} parent=5 // pred_fallthru
        _
      %p253 = scmp.lt.s32.totalorder %s20, 8
      // Predicated region
      $region21: #{tpu_custom_call.1} parent=5 // pred_check
        %p254 = pneg %p253
      $region22: #{tpu_custom_call.1} parent=5 // pred_check_branch
        %256 = sbr.rel (%p254) target = $region24
      $region23: #{tpu_custom_call.1} parent=5 // pred_region
        // Predicated region
        $region25: #{tpu_custom_call.1} parent=23 // pred_check
          %p257 = pneg %p52
        $region26: #{tpu_custom_call.1} parent=23 // pred_check_branch
          %259 = sbr.rel (%p257) target = $region28
        $region27: #{tpu_custom_call.1} parent=23 // pred_region
          %p260 = scmp.lt.s32.totalorder %s27, 1
          %s261 = scalar_select %p260, %s27, 1
          %s262 = smul.addr %s261, 8
          %s263 = scalar_lea.vmem %s0, %s262
        $region28: #{tpu_custom_call.1} parent=23 // pred_fallthru
          _
        // Predicated region
        $region29: #{tpu_custom_call.1} parent=23 // pred_check
          %p264 = pneg %p78
        $region30: #{tpu_custom_call.1} parent=23 // pred_check_branch
          %266 = sbr.rel (%p264) target = $region32
        $region31: #{tpu_custom_call.1} parent=23 // pred_region
          %p267 = scmp.lt.s32.totalorder %s28, 3
          %s268 = scalar_select %p267, %s28, 3
          %s269 = smul.addr %s268, 4
          %s270 = smul.addr %s269, 4
          %s271 = scalar_lea.vmem %s1, %s270
        $region32: #{tpu_custom_call.1} parent=23 // pred_fallthru
          _
        // Predicated region
        $region33: #{tpu_custom_call.1} parent=23 // pred_check
          %p272 = pneg %p104
        $region34: #{tpu_custom_call.1} parent=23 // pred_check_branch
          %274 = sbr.rel (%p272) target = $region36
        $region35: #{tpu_custom_call.1} parent=23 // pred_region
          %p275 = scmp.lt.s32.totalorder %s28, 3
          %s276 = scalar_select %p275, %s28, 3
          %s277 = smul.addr %s276, 4
          %s278 = smul.addr %s277, 4
          %s279 = scalar_lea.vmem %s2, %s278
        $region36: #{tpu_custom_call.1} parent=23 // pred_fallthru
          _
        // Predicated region
        $region37: #{tpu_custom_call.1} parent=23 // pred_check
          %p280 = pneg %p130
        $region38: #{tpu_custom_call.1} parent=23 // pred_check_branch
          %282 = sbr.rel (%p280) target = $region40
        $region39: #{tpu_custom_call.1} parent=23 // pred_region
          %p283 = scmp.lt.s32.totalorder %s28, 3
          %s284 = scalar_select %p283, %s28, 3
          %s285 = smul.addr %s284, 4
          %s286 = smul.addr %s285, 4
          %s287 = scalar_lea.vmem %s3, %s286
        $region40: #{tpu_custom_call.1} parent=23 // pred_fallthru
          _
      $region24: #{tpu_custom_call.1} parent=5 // pred_fallthru
        _
      %p288 = scmp.le.s32.totalorder 1, %s20
      %p289 = scmp.lt.s32.totalorder %s20, 9
      %p290 = pnand %p288, %p289
      %p291 = pneg %p290
      // Predicated region
      $region41: #{tpu_custom_call.1} parent=5 // pred_check
        _
      $region42: #{tpu_custom_call.1} parent=5 // pred_check_branch
        %293 = sbr.rel (%p290) target = $region44
      $region43: #{tpu_custom_call.1} parent=5 // pred_region
        %s294 = ssub.s32 %s20, 1
        %p295 = scmp.lt.s32.totalorder %s29, 1
        %s296 = scalar_select %p295, %s29, 1
        %s297 = smul.addr %s296, 8
        %s298 = scalar_lea.vmem %s0, %s297
        %p299 = pneg %p58
        %p300 = pneg %p55
        %p301 = scmp.lt.s32.totalorder %s30, 3
        %s302 = scalar_select %p301, %s30, 3
        %s303 = smul.addr %s302, 4
        %s304 = smul.addr %s303, 4
        %s305 = scalar_lea.vmem %s1, %s304
        %p306 = pneg %p84
        %p307 = pneg %p81
        %p308 = scmp.lt.s32.totalorder %s30, 3
        %s309 = scalar_select %p308, %s30, 3
        %s310 = smul.addr %s309, 4
        %s311 = smul.addr %s310, 4
        %s312 = scalar_lea.vmem %s2, %s311
        %p313 = pneg %p110
        %p314 = pneg %p107
        %p315 = scmp.lt.s32.totalorder %s30, 3
        %s316 = scalar_select %p315, %s30, 3
        %s317 = smul.addr %s316, 4
        %s318 = smul.addr %s317, 4
        %s319 = scalar_lea.vmem %s3, %s318
        %p320 = pneg %p136
        %p321 = pneg %p133
        %p322 = pneg %p157
        %p323 = pneg %p154
        %p324 = pneg %p178
        %p325 = pneg %p175
        %p326 = pneg %p204
        %p327 = pneg %p201
        %s328 = sand.u32 %s191, 1
        %s329 = scalar_lea.sflag [#allocation4], %s328
        %s330 = sand.u32 %s191, 1
        %s331 = smul.addr %s330, 8
        %s332 = scalar_lea.vmem [#allocation3], %s331
        %p333 = pneg %p232
        %p334 = pneg %p229
        %s335 = sand.u32 %s219, 1
        %s336 = scalar_lea.sflag [#allocation6], %s335
        %s337 = sand.u32 %s219, 1
        %s338 = smul.addr %s337, 8
        %s339 = scalar_lea.vmem [#allocation5], %s338
        %p340 = scmp.lt.s32.totalorder %s29, 1
        %s341 = scalar_select %p340, %s29, 1
        %s342 = smul.addr %s341, 8
        %s343 = scalar_lea.vmem %s0, %s342
        %p344 = scmp.lt.s32.totalorder %s30, 3
        %s345 = scalar_select %p344, %s30, 3
        %s346 = smul.addr %s345, 4
        %s347 = smul.addr %s346, 4
        %s348 = scalar_lea.vmem %s1, %s347
        %p349 = scmp.lt.s32.totalorder %s30, 3
        %s350 = scalar_select %p349, %s30, 3
        %s351 = smul.addr %s350, 4
        %s352 = smul.addr %s351, 4
        %s353 = scalar_lea.vmem %s2, %s352
        %p354 = scmp.lt.s32.totalorder %s30, 3
        %s355 = scalar_select %p354, %s30, 3
        %s356 = smul.addr %s355, 4
        %s357 = smul.addr %s356, 4
        %s358 = scalar_lea.vmem %s3, %s357
        %v360 = vld [vmem:[%s343] sm:$0xff]
        %v361 = vpack.c.bf16 %v360, %v360
        %v362 = vld [vmem:[%s348] sm:$0xf]
        %v363 = vld [vmem:[%s348 + $0x4] sm:$0xf]
        %v364 = vld [vmem:[%s348 + $0x8] sm:$0xf]
        %v365 = vld [vmem:[%s348 + $0xc] sm:$0xf]
        %v370 = vunpack.c.l.b16 %v362
        %v371 = vunpack.c.l.b16 %v363
        %v372 = vunpack.c.l.b16 %v364
        %v373 = vunpack.c.l.b16 %v365
        %v374 = vpack.c.b16 %v371, %v370
        %v375 = vpack.c.b16 %v373, %v372
        %vm378 = vcmask 261120
        %v380 = vsel %vm378, %v361, 0
        %382 = vmatpush.bf16.msra.mxu0 0
        %383 = vmatpush.bf16.msra.mxu0 0
        %384 = vmatpush.bf16.msra.mxu0 0
        %385 = vmatpush.bf16.msra.mxu0 0
        %386 = vmatpush.bf16.msra.mxu0 0
        %387 = vmatpush.bf16.msra.mxu0 0
        %388 = vmatpush.bf16.msra.mxu0 %v375
        %389 = vmatpush.bf16.msra.mxu0 %v374
        %390 = vmatmul.bf16.gmra.mxu0 %v380
        %v391 = vpop.f32.mrf.mxu0
        %v392 = vadd.f32 0.0, %v391
        %v393 = vpop.f32.mrf.mxu0
        %394 = vdwg.mxu0
        %v395 = vld [vmem:[%s353] sm:$0xf]
        %v396 = vld [vmem:[%s353 + $0x4] sm:$0xf]
        %v397 = vld [vmem:[%s353 + $0x8] sm:$0xf]
        %v398 = vld [vmem:[%s353 + $0xc] sm:$0xf]
        %v403 = vunpack.c.l.b16 %v395
        %v404 = vunpack.c.l.b16 %v396
        %v405 = vunpack.c.l.b16 %v397
        %v406 = vunpack.c.l.b16 %v398
        %v407 = vpack.c.b16 %v404, %v403
        %v408 = vpack.c.b16 %v406, %v405
        %411 = vmatpush.bf16.msra.mxu0 0
        %412 = vmatpush.bf16.msra.mxu0 0
        %413 = vmatpush.bf16.msra.mxu0 0
        %414 = vmatpush.bf16.msra.mxu0 0
        %415 = vmatpush.bf16.msra.mxu0 0
        %416 = vmatpush.bf16.msra.mxu0 0
        %417 = vmatpush.bf16.msra.mxu0 %v408
        %418 = vmatpush.bf16.msra.mxu0 %v407
        %419 = vmatmul.bf16.gmra.mxu0 %v380
        %v420 = vpop.f32.mrf.mxu0
        %v421 = vadd.f32 0.0, %v420
        %v422 = vpop.f32.mrf.mxu0
        %423 = vdwg.mxu0
        %v424 = vld [vmem:[%s358] sm:$0xf]
        %v425 = vld [vmem:[%s358 + $0x4] sm:$0xf]
        %v426 = vld [vmem:[%s358 + $0x8] sm:$0xf]
        %v427 = vld [vmem:[%s358 + $0xc] sm:$0xf]
        %v432 = vunpack.c.l.b16 %v424
        %v433 = vunpack.c.l.b16 %v425
        %v434 = vunpack.c.l.b16 %v426
        %v435 = vunpack.c.l.b16 %v427
        %v436 = vpack.c.b16 %v433, %v432
        %v437 = vpack.c.b16 %v435, %v434
        %440 = vmatpush.bf16.msra.mxu0 0
        %441 = vmatpush.bf16.msra.mxu0 0
        %442 = vmatpush.bf16.msra.mxu0 0
        %443 = vmatpush.bf16.msra.mxu0 0
        %444 = vmatpush.bf16.msra.mxu0 0
        %445 = vmatpush.bf16.msra.mxu0 0
        %446 = vmatpush.bf16.msra.mxu0 %v437
        %447 = vmatpush.bf16.msra.mxu0 %v436
        %448 = vmatmul.bf16.gmra.mxu0 %v380
        %v449 = vpop.f32.mrf.mxu0
        %v450 = vadd.f32 0.0, %v449
        %v451 = vpop.f32.mrf.mxu0
        %452 = vdwg.mxu0
        %v453 = vpack.c.bf16 %v450, %v450
        %v454 = vpack.c.bf16 %v392, %v392
        %v455 = vpack.c.bf16 %v421, %v421
        %vm456 = vcmask 64512
        %v458 = vsel %vm456, %v454, 0
        %v461 = vsel %vm456, %v455, 0
        %463 = vmatpush.bf16.xpose.msra.mxu0 0
        %464 = vmatpush.bf16.xpose.msra.mxu0 0
        %465 = vmatpush.bf16.xpose.msra.mxu0 0
        %466 = vmatpush.bf16.xpose.msra.mxu0 0
        %467 = vmatpush.bf16.xpose.msra.mxu0 0
        %468 = vmatpush.bf16.xpose.msra.mxu0 0
        %469 = vmatpush.bf16.xpose.msra.mxu0 0
        %470 = vmatpush.bf16.xpose.msra.mxu0 %v461
        %471 = vmatmul.bf16.gmra.mxu0 %v458
        %v472 = vpop.f32.mrf.mxu0
        %v473 = vadd.f32 0.0, %v472
        %v474 = vpop.f32.mrf.mxu0
        %475 = vdwg.mxu0
        %v476 = vsel %vm456, %v473, -inf
        %477 = vmax.xlane.f32.xlu0 %v476
        %v478 = vpop.xlane.xlu0 %477
        %v479 = vsub.f32 %v473, %v478
        %v480 = vmul.f32 %v479, 1.442695
        %v481 = vpow.pop %v480
        %v482 = vsel %vm456, %v481, 0.0
        %483 = vadd.xlane.f32.xlu0 %v482
        %v484 = vpop.xlane.xlu0 %483
        %v485 = vrcp.pop %v484
        %v486 = vmul.f32 %v484, %v485
        %v487 = vsub.f32 1.0, %v486
        %v488 = vmul.f32 %v485, %v487
        %v489 = vadd.f32 %v485, %v488
        %vm490 = vweird.f32 %v484
        %vm491 = vweird.f32 %v485
        %vm492 = vmor %vm490, %vm491
        %v493 = vsel %vm492, %v485, %v489
        %v494 = vand.u32 2147483647, %v484
        %vm495 = vcmp.eq.f32.partialorder %v494, 8.507059e+37
        %v496 = vand.u32 %v484, 2147483648
        %v497 = vor.u32 1.1754944e-38, %v496
        %v498 = vsel %vm495, %v497, %v493
        %v499 = vmul.f32 1.0, %v498
        %v500 = vmul.f32 %v481, %v499
        %501 = vst.msk [vmem:[%s339] sm:$0xff] %vm456, %v500
        %v502 = vpack.c.bf16 %v500, %v500
        %v504 = vsel %vm456, %v502, 0
        %vm506 = vcmask 1043456
        %v508 = vsel %vm506, %v453, 0
        %510 = vmatpush.bf16.msra.mxu0 0
        %511 = vmatpush.bf16.msra.mxu0 0
        %512 = vmatpush.bf16.msra.mxu0 0
        %513 = vmatpush.bf16.msra.mxu0 0
        %514 = vmatpush.bf16.msra.mxu0 0
        %515 = vmatpush.bf16.msra.mxu0 0
        %516 = vmatpush.bf16.msra.mxu0 0
        %517 = vmatpush.bf16.msra.mxu0 %v508
        %518 = vmatmul.bf16.gmra.mxu0 %v504
        %v519 = vpop.f32.mrf.mxu0
        %v520 = vadd.f32 0.0, %v519
        %v521 = vpop.f32.mrf.mxu0
        %522 = vdwg.mxu0
        %v523 = vpack.c.bf16 %v520, %v520
        %p524 = scmp.eq.s32.totalorder %s30, 0
        // Predicated region
        $region45: #{tpu_custom_call.1} parent=43 // pred_check
          %p525 = pneg %p524
        $region46: #{tpu_custom_call.1} parent=43 // pred_check_branch
          %527 = sbr.rel (%p525) target = $region48
        $region47: #{tpu_custom_call.1} parent=43 // pred_region
          %vm528 = vcmask 60416
          %529 = vst.msk [vmem:[#allocation2] sm:$0xf] %vm528, %v523
        $region48: #{tpu_custom_call.1} parent=43 // pred_fallthru
          _
        %p530 = scmp.eq.s32.totalorder %s30, 1
        // Predicated region
        $region49: #{tpu_custom_call.1} parent=43 // pred_check
          %p531 = pneg %p530
        $region50: #{tpu_custom_call.1} parent=43 // pred_check_branch
          %533 = sbr.rel (%p531) target = $region52
        $region51: #{tpu_custom_call.1} parent=43 // pred_region
          %535 = vrot.lane.b32.xlu0 %v523, 8
          %v536 = vpop.permute.xlu0 %535
          %vm538 = vcmask 126016
          %539 = vst.msk [vmem:[#allocation2] sm:$0xf] %vm538, %v536
        $region52: #{tpu_custom_call.1} parent=43 // pred_fallthru
          _
        %p540 = scmp.eq.s32.totalorder %s30, 2
        // Predicated region
        $region53: #{tpu_custom_call.1} parent=43 // pred_check
          %p541 = pneg %p540
        $region54: #{tpu_custom_call.1} parent=43 // pred_check_branch
          %543 = sbr.rel (%p541) target = $region56
        $region55: #{tpu_custom_call.1} parent=43 // pred_region
          %545 = vrot.lane.b32.xlu0 %v523, 16
          %v546 = vpop.permute.xlu0 %545
          %vm548 = vcmask 191616
          %549 = vst.msk [vmem:[#allocation2] sm:$0xf] %vm548, %v546
        $region56: #{tpu_custom_call.1} parent=43 // pred_fallthru
          _
        %p550 = scmp.eq.s32.totalorder %s30, 3
        // Predicated region
        $region57: #{tpu_custom_call.1} parent=43 // pred_check
          %p551 = pneg %p550
        $region58: #{tpu_custom_call.1} parent=43 // pred_check_branch
          %553 = sbr.rel (%p551) target = $region60
        $region59: #{tpu_custom_call.1} parent=43 // pred_region
          %555 = vrot.lane.b32.xlu0 %v523, 24
          %v556 = vpop.permute.xlu0 %555
          %vm558 = vcmask 257216
          %559 = vst.msk [vmem:[#allocation2] sm:$0xf] %vm558, %v556
          %v560 = vld [vmem:[#allocation2] sm:$0xf]
          %v561 = vld [vmem:[%s4] sm:$0xf]
          %v562 = vld [vmem:[%s4 + $0x4] sm:$0xf]
          %v563 = vld [vmem:[%s4 + $0x8] sm:$0xf]
          %v564 = vld [vmem:[%s4 + $0xc] sm:$0xf]
          %v565 = vld [vmem:[%s5] sm:$0x1]
          %v567 = vperm.slane %v565, 0
          %v573 = vunpack.c.l.b16 %v561
          %v574 = vunpack.c.l.b16 %v562
          %v575 = vunpack.c.l.b16 %v563
          %v576 = vunpack.c.l.b16 %v564
          %v577 = vpack.c.b16 %v574, %v573
          %v578 = vpack.c.b16 %v576, %v575
          %v582 = vsel %vm378, %v560, 0
          %584 = vmatpush.bf16.msra.mxu0 0
          %585 = vmatpush.bf16.msra.mxu0 0
          %586 = vmatpush.bf16.msra.mxu0 0
          %587 = vmatpush.bf16.msra.mxu0 0
          %588 = vmatpush.bf16.msra.mxu0 0
          %589 = vmatpush.bf16.msra.mxu0 0
          %590 = vmatpush.bf16.msra.mxu0 %v578
          %591 = vmatpush.bf16.msra.mxu0 %v577
          %592 = vmatmul.bf16.gmra.mxu0 %v582
          %v593 = vpop.f32.mrf.mxu0
          %v594 = vadd.f32 %v567, %v593
          %v595 = vpop.f32.mrf.mxu0
          %596 = vdwg.mxu0
          %597 = vst.msk [vmem:[%s332] sm:$0xff] %vm378, %v594
        $region60: #{tpu_custom_call.1} parent=43 // pred_fallthru
          _
        %s598 = sand.u32 %s191, 1
        %s599 = scalar_lea.sflag [#allocation4], %s598
        %s600 = sand.u32 %s191, 1
        %s601 = smul.addr %s600, 8
        %s602 = scalar_lea.vmem [#allocation3], %s601
        %s603 = sand.u32 %s219, 1
        %s604 = scalar_lea.sflag [#allocation6], %s603
        %s605 = sand.u32 %s219, 1
        %s606 = smul.addr %s605, 8
        %s607 = scalar_lea.vmem [#allocation5], %s606
        // Predicated region
        $region61: #{tpu_custom_call.1} parent=43 // pred_check
          %p608 = pneg %p201
        $region62: #{tpu_custom_call.1} parent=43 // pred_check_branch
          %610 = sbr.rel (%p608) target = $region64
        $region63: #{tpu_custom_call.1} parent=43 // pred_region
          %612 = vsyncadd %s599, 0
          %s613 = smul.addr %s29, 8
          %s614 = scalar_lea.hbm %s6, %s613
          %s616 = sshll.u32 %s602, 4
          %s617 = int_to_ptr.vmem [resolvable:$true] %s616
          %s618 = sshll.u32 %s614, 4
          %s619 = int_to_ptr.hbm [resolvable:$true] %s618
          %621 = dma.vmem_to_hbm [thread:$0]  %s617, 128, %s619, %s599
        $region64: #{tpu_custom_call.1} parent=43 // pred_fallthru
          _
        // Predicated region
        $region65: #{tpu_custom_call.1} parent=43 // pred_check
          %p622 = pneg %p229
        $region66: #{tpu_custom_call.1} parent=43 // pred_check_branch
          %624 = sbr.rel (%p622) target = $region68
        $region67: #{tpu_custom_call.1} parent=43 // pred_region
          %626 = vsyncadd %s604, 0
          %s627 = smul.addr %s29, 4
          %s628 = sadd.s32 %s30, %s627
          %s629 = smul.addr %s628, 8
          %s630 = scalar_lea.hbm %s7, %s629
          %s632 = sshll.u32 %s607, 4
          %s633 = int_to_ptr.vmem [resolvable:$true] %s632
          %s634 = sshll.u32 %s630, 4
          %s635 = int_to_ptr.hbm [resolvable:$true] %s634
          %637 = dma.vmem_to_hbm [thread:$0]  %s633, 128, %s635, %s604
        $region68: #{tpu_custom_call.1} parent=43 // pred_fallthru
          _
      $region44: #{tpu_custom_call.1} parent=5 // pred_fallthru
        _
      %p638 = scmp.le.s32.totalorder 2, %s20
      // Predicated region
      $region69: #{tpu_custom_call.1} parent=5 // pred_check
        %p639 = pneg %p638
      $region70: #{tpu_custom_call.1} parent=5 // pred_check_branch
        %641 = sbr.rel (%p639) target = $region72
      $region71: #{tpu_custom_call.1} parent=5 // pred_region
        %s642 = ssub.s32 %s20, 2
        // Predicated region
        $region73: #{tpu_custom_call.1} parent=71 // pred_check
          %p643 = pneg %p207
        $region74: #{tpu_custom_call.1} parent=71 // pred_check_branch
          %645 = sbr.rel (%p643) target = $region76
        $region75: #{tpu_custom_call.1} parent=71 // pred_region
          %s646 = sand.u32 %s192, 1
          %s647 = scalar_lea.sflag [#allocation4], %s646
          %s648 = sand.u32 %s192, 1
          %s649 = smul.addr %s648, 8
          %s650 = scalar_lea.vmem [#allocation3], %s649
          %652 = dma.done %s647, 128
        $region76: #{tpu_custom_call.1} parent=71 // pred_fallthru
          _
        // Predicated region
        $region77: #{tpu_custom_call.1} parent=71 // pred_check
          %p653 = pneg %p235
        $region78: #{tpu_custom_call.1} parent=71 // pred_check_branch
          %655 = sbr.rel (%p653) target = $region80
        $region79: #{tpu_custom_call.1} parent=71 // pred_region
          %s656 = sand.u32 %s220, 1
          %s657 = scalar_lea.sflag [#allocation6], %s656
          %s658 = sand.u32 %s220, 1
          %s659 = smul.addr %s658, 8
          %s660 = scalar_lea.vmem [#allocation5], %s659
          %662 = dma.done %s657, 128
        $region80: #{tpu_custom_call.1} parent=71 // pred_fallthru
          _
      $region72: #{tpu_custom_call.1} parent=5 // pred_fallthru
        _
    $region6: #{tpu_custom_call.1} parent=1 // loop_footer
      %s24 = sadd.s32 1, %s20
    $region7: #{tpu_custom_call.1} parent=1 // loop_footer_branch
      %19 = sbr.rel target = $region3
    $region8: #{tpu_custom_call.1} parent=1 // loop_exit
      _
    %663 = vsyncpa [#allocation4], 1
    %s664 = scalar_lea.sflag [#allocation4], 1
    %665 = vsyncpa %s664, 1
    %666 = vsyncpa [#allocation6], 1
    %s667 = scalar_lea.sflag [#allocation6], 1
    %668 = vsyncpa %s667, 1

</llo_original>
